<compile_context>
chip_gen: v6e
topology: v6e:2x2x1
jax: 0.10.0
libtpu: 0.0.40
codegen_flags: <defaults>
</compile_context>

<pallas_src>
import functools

import jax
import jax.numpy as jnp
from jax.experimental import pallas as pl
from jax.experimental.pallas import tpu as pltpu


# --------------------------------------------------------------------------- #
# host-side (plain XLA) one-shot preparation                                   #
# --------------------------------------------------------------------------- #
def _chebyshev_supports(node_emb, cheb_k):
    """softmax(relu(E E^T), dim=1) + Chebyshev stack -> (K, N, N) float32."""
    e = node_emb.astype(jnp.float32)
    n = e.shape[0]
    s = jax.nn.softmax(jnp.maximum(e @ e.T, 0.0), axis=1)
    sset = [jnp.eye(n, dtype=jnp.float32), s]
    for _ in range(2, cheb_k):
        sset.append(2.0 * s @ sset[-1] - sset[-2])
    return jnp.stack(sset, axis=0)


def _pack_pool(pool):
    """(D, K, I, O) weight pool -> (K, I, D*O); columns ordered (d, o)."""
    d, k, i, o = pool.shape
    return jnp.transpose(pool.astype(jnp.float32), (1, 2, 0, 3)).reshape(k, i, d * o)


def _expand_embeddings(node_emb, out_dim, batch):
    """(N, D) -> (B*N, D*out_dim) with E_exp[b*N+n, d*out_dim+o] = E[n, d]."""
    e = jnp.repeat(node_emb.astype(jnp.float32), out_dim, axis=1)   # (N, D*O)
    return jnp.tile(e, (batch, 1))


# --------------------------------------------------------------------------- #
# fused time-scan kernel (grid=(T,), hidden state in VMEM scratch)             #
# --------------------------------------------------------------------------- #
def _agcrn_scan_kernel(x_ref, h0_ref, sup_ref, pgx_ref, pgh_ref, pux_ref,
                       puh_ref, egx_ref, egu_ref, bg_ref, bu_ref,
                       out_ref, h_scr, *,
                       batch, nodes, cheb_k, embed_dim, hidden, mxu_dtype):
    t = pl.program_id(0)

    @pl.when(t == 0)
    def _():
        h_scr[...] = h0_ref[...]

    n = nodes
    h_dim = hidden
    two_h = 2 * hidden

    x = x_ref[0].astype(mxu_dtype)            # (B*N, Cin)  MXU operand
    h = h_scr[...]                            # (B*N, H)    f32 state
    h_mx = h.astype(mxu_dtype)

    def apply_support(k, slab):
        """sup[k] applied per-batch to a (B*N, C) slab; k == 0 is identity."""
        if k == 0:
            return slab
        s = sup_ref[k - 1]                    # (N, N)
        rows = [
            jnp.dot(s, slab[b * n:(b + 1) * n, :],
                    preferred_element_type=jnp.float32).astype(mxu_dtype)
            for b in range(batch)
        ]
        return jnp.concatenate(rows, axis=0) if batch > 1 else rows[0]

    # supports applied to x_t — shared by the gate and the candidate gconv.
    gx = [apply_support(k, x) for k in range(cheb_k)]

    def gconv(other_slab, px_ref, ph_ref):
        """sum_k  [sup_k x | sup_k other] @ [Px_k ; Ph_k]  -> (B*N, D*O) f32."""
        acc = None
        for k in range(cheb_k):
            g_other = apply_support(k, other_slab)
            term = (jnp.dot(gx[k], px_ref[k], preferred_element_type=jnp.float32)
                    + jnp.dot(g_other, ph_ref[k],
                              preferred_element_type=jnp.float32))
            acc = term if acc is None else acc + term
        return acc

    def finish(v, e_exp, bias, out_dim):
        """fold E[n, d] (pre-expanded over (d, o) columns) and reduce over d."""
        w = e_exp * v
        acc = bias
        for d in range(embed_dim):
            acc = acc + w[:, d * out_dim:(d + 1) * out_dim]
        return acc

    # ---- gate:  z_r = sigmoid( AVWGCN(cat(x_t, h)) ) -----------------------
    zr = finish(gconv(h_mx, pgx_ref, pgh_ref), egx_ref[...], bg_ref[...], two_h)
    zr = jax.nn.sigmoid(zr)
    z = zr[:, :h_dim]
    r = zr[:, h_dim:]

    # ---- candidate:  hc = tanh( AVWGCN(cat(x_t, z*h)) ) --------------------
    zh = (z * h).astype(mxu_dtype)
    c = finish(gconv(zh, pux_ref, puh_ref), egu_ref[...], bu_ref[...], h_dim)
    hc = jnp.tanh(c)

    h_new = r * h + (1.0 - r) * hc            # f32 gate math (v5e-safe)
    h_scr[...] = h_new
    out_ref[0] = h_new


def _run_scan(x_tmc, h0, sup_rest, pgx, pgh, pux, puh, egx, egu, bg, bu,
              batch, nodes, cheb_k, embed_dim, hidden, mxu_dtype):
    T, M, cin = x_tmc.shape
    kernel = functools.partial(
        _agcrn_scan_kernel, batch=batch, nodes=nodes, cheb_k=cheb_k,
        embed_dim=embed_dim, hidden=hidden, mxu_dtype=mxu_dtype)

    def const(arr):
        shape = arr.shape
        return pl.BlockSpec(shape, lambda t: (0,) * len(shape))

    return pl.pallas_call(
        kernel,
        grid=(T,),
        in_specs=[
            pl.BlockSpec((1, M, cin), lambda t: (t, 0, 0)),   # x_t stream
            const(h0), const(sup_rest),
            const(pgx), const(pgh), const(pux), const(puh),
            const(egx), const(egu), const(bg), const(bu),
        ],
        out_specs=pl.BlockSpec((1, M, hidden), lambda t: (t, 0, 0)),
        out_shape=jax.ShapeDtypeStruct((T, M, hidden), jnp.float32),
        scratch_shapes=[pltpu.VMEM((M, hidden), jnp.float32)],
        compiler_params=pltpu.CompilerParams(
            dimension_semantics=("arbitrary",)),
    )(x_tmc, h0, sup_rest, pgx, pgh, pux, puh, egx, egu, bg, bu)


# --------------------------------------------------------------------------- #
# public API                                                                   #
# --------------------------------------------------------------------------- #
def agcrn_cell_sequence(x, init_state, node_embeddings,
                        gate_weights_pool, gate_bias_pool,
                        update_weights_pool, update_bias_pool, cheb_k,
                        mxu_dtype=jnp.bfloat16):
    """Apply the AGCRN cell recurrently over x: (B, T, N, dim_in).

    Returns (all hidden states (B, T, N, H), final state (B, N, H)).
    """
    B, T, N, dim_in = x.shape
    hidden = init_state.shape[-1]
    D = node_embeddings.shape[1]
    e = node_embeddings.astype(jnp.float32)

    sup = _chebyshev_supports(e, cheb_k)                      # (K, N, N)
    sup_rest = sup[1:].astype(mxu_dtype)                      # k=0 is identity (in-kernel)

    pg = _pack_pool(gate_weights_pool)                        # (K, C, D*2H)
    pu = _pack_pool(update_weights_pool)                      # (K, C, D*H)
    pgx = pg[:, :dim_in, :].astype(mxu_dtype)
    pgh = pg[:, dim_in:, :].astype(mxu_dtype)
    pux = pu[:, :dim_in, :].astype(mxu_dtype)
    puh = pu[:, dim_in:, :].astype(mxu_dtype)

    egx = _expand_embeddings(e, 2 * hidden, B)                # (B*N, D*2H) f32
    egu = _expand_embeddings(e, hidden, B)                    # (B*N, D*H)  f32
    bg = jnp.tile(e @ gate_bias_pool.astype(jnp.float32), (B, 1))    # (B*N, 2H)
    bu = jnp.tile(e @ update_bias_pool.astype(jnp.float32), (B, 1))  # (B*N, H)

    x_tmc = (jnp.transpose(x, (1, 0, 2, 3))
             .reshape(T, B * N, dim_in).astype(mxu_dtype))    # time-leading
    h0 = init_state.astype(jnp.float32).reshape(B * N, hidden)

    h_all = _run_scan(x_tmc, h0, sup_rest, pgx, pgh, pux, puh, egx, egu,
                      bg, bu, B, N, cheb_k, D, hidden, mxu_dtype)
    out = jnp.transpose(h_all.reshape(T, B, N, hidden), (1, 0, 2, 3))
    return out, out[:, -1]


def agcrn_cell_forward(x, state, node_embeddings,
                       gate_weights_pool, gate_bias_pool,
                       update_weights_pool, update_bias_pool, cheb_k,
                       mxu_dtype=jnp.bfloat16):
    """Single AGCRNCell.forward step: x (B, N, dim_in), state (B, N, H) -> h."""
    _, h = agcrn_cell_sequence(x[:, None], state, node_embeddings,
                               gate_weights_pool, gate_bias_pool,
                               update_weights_pool, update_bias_pool, cheb_k,
                               mxu_dtype=mxu_dtype)
    return h


# --------------------------------------------------------------------------- #
# pure-JAX reference (mirrors the PyTorch module) for correctness checking     #
# --------------------------------------------------------------------------- #
def _ref_avwgcn(x, node_emb, wpool, bpool, cheb_k):
    n = node_emb.shape[0]
    s = jax.nn.softmax(jnp.maximum(node_emb @ node_emb.T, 0.0), axis=1)
    sset = [jnp.eye(n, dtype=jnp.float32), s]
    for _ in range(2, cheb_k):
        sset.append(2.0 * s @ sset[-1] - sset[-2])
    sup = jnp.stack(sset, 0)
    weights = jnp.einsum('nd,dkio->nkio', node_emb, wpool)
    bias = node_emb @ bpool
    x_g = jnp.einsum('knm,bmc->bknc', sup, x)
    x_g = jnp.transpose(x_g, (0, 2, 1, 3))
    return jnp.einsum('bnki,nkio->bno', x_g, weights) + bias


def _ref_cell(x, state, node_emb, gw, gb, uw, ub, cheb_k, hidden):
    inp = jnp.concatenate([x, state], -1)
    zr = jax.nn.sigmoid(_ref_avwgcn(inp, node_emb, gw, gb, cheb_k))
    z, r = zr[..., :hidden], zr[..., hidden:]
    cand = jnp.concatenate([x, z * state], -1)
    hc = jnp.tanh(_ref_avwgcn(cand, node_emb, uw, ub, cheb_k))
    return r * state + (1.0 - r) * hc


# --------------------------------------------------------------------------- #
if __name__ == "__main__":
    B, T, N, DIM_IN, HID, CHEB_K, EMB = 2, 8, 16, 4, 32, 2, 8

    key = jax.random.PRNGKey(0)
    key, kx, ke, ks, k1, k2, k3, k4 = jax.random.split(key, 8)
    x_seq = jax.random.normal(kx, (B, T, N, DIM_IN), jnp.float32)
    node_emb = jax.random.normal(ke, (N, EMB), jnp.float32)
    h0 = 0.1 * jax.random.normal(ks, (B, N, HID), jnp.float32)
    C = DIM_IN + HID
    gate_w = 0.1 * jax.random.normal(k1, (EMB, CHEB_K, C, 2 * HID), jnp.float32)
    gate_b = 0.1 * jax.random.normal(k2, (EMB, 2 * HID), jnp.float32)
    upd_w = 0.1 * jax.random.normal(k3, (EMB, CHEB_K, C, HID), jnp.float32)
    upd_b = 0.1 * jax.random.normal(k4, (EMB, HID), jnp.float32)

    # step-by-step PyTorch-equivalent reference
    state = h0
    ref_steps = []
    for t in range(T):
        state = _ref_cell(x_seq[:, t], state, node_emb, gate_w, gate_b,
                          upd_w, upd_b, CHEB_K, HID)
        ref_steps.append(state)
    ref_seq = jnp.stack(ref_steps, axis=1)

    # --- f32 MXU path: tight structural verification -------------------------
    seq_f32 = jax.jit(functools.partial(agcrn_cell_sequence, cheb_k=CHEB_K,
                                        mxu_dtype=jnp.float32))
    out_f32, last_f32 = seq_f32(x_seq, h0, node_emb, gate_w, gate_b,
                                upd_w, upd_b)
    out_f32 = jax.block_until_ready(out_f32)
    assert out_f32.shape == (B, T, N, HID)
    err_f32 = float(jnp.max(jnp.abs(out_f32 - ref_seq)))
    assert err_f32 < 1e-3, err_f32
    err_f32_last = float(jnp.max(jnp.abs(last_f32 - ref_seq[:, -1])))
    assert err_f32_last < 1e-3, err_f32_last

    # --- bf16-MXU path (production path on v6e/v7x): loose tolerance ---------
    seq_bf16 = jax.jit(functools.partial(agcrn_cell_sequence, cheb_k=CHEB_K))
    out_bf16, last_bf16 = seq_bf16(x_seq, h0, node_emb, gate_w, gate_b,
                                   upd_w, upd_b)
    out_bf16 = jax.block_until_ready(out_bf16)
    err_bf16 = float(jnp.max(jnp.abs(out_bf16 - ref_seq)))
    assert err_bf16 < 1.5e-1, err_bf16

    # --- single-step AGCRNCell.forward semantics ------------------------------
    step_fn = jax.jit(functools.partial(agcrn_cell_forward, cheb_k=CHEB_K))
    h1 = jax.block_until_ready(
        step_fn(x_seq[:, 0], h0, node_emb, gate_w, gate_b, upd_w, upd_b))
    err_step = float(jnp.max(jnp.abs(h1 - ref_seq[:, 0])))
    assert err_step < 8e-2, err_step

    print("KERNEL_OK")
</pallas_src>

<mosaic_0001>
module attributes {stable_mosaic.version = 11 : i64} {
  func.func @_agcrn_scan_kernel(%arg0: i32, %arg1: memref<1x32x4xf32, #tpu.memory_space<vmem>>, %arg2: memref<32x32xf32, #tpu.memory_space<vmem>>, %arg3: memref<1x16x16xf32, #tpu.memory_space<vmem>>, %arg4: memref<2x4x512xf32, #tpu.memory_space<vmem>>, %arg5: memref<2x32x512xf32, #tpu.memory_space<vmem>>, %arg6: memref<2x4x256xf32, #tpu.memory_space<vmem>>, %arg7: memref<2x32x256xf32, #tpu.memory_space<vmem>>, %arg8: memref<32x512xf32, #tpu.memory_space<vmem>>, %arg9: memref<32x256xf32, #tpu.memory_space<vmem>>, %arg10: memref<32x64xf32, #tpu.memory_space<vmem>>, %arg11: memref<32x32xf32, #tpu.memory_space<vmem>>, %arg12: memref<1x32x32xf32, #tpu.memory_space<vmem>>, %arg13: memref<32x32xf32, #tpu.memory_space<vmem>>) attributes {dimension_semantics = [#tpu.dimension_semantics<arbitrary>], iteration_bounds = array<i64: 8>, scalar_prefetch = 0 : i64, scratch_operands = 1 : i64, tpu.core_type = #tpu.core_type<tc>, window_params = [{transform_indices = @transform_0, window_bounds = array<i64: 1, 32, 4>}, {pipeline_mode = #tpu.pipeline_mode<synchronous>, transform_indices = @transform_1, window_bounds = array<i64: 32, 32>}, {pipeline_mode = #tpu.pipeline_mode<synchronous>, transform_indices = @transform_2, window_bounds = array<i64: 1, 16, 16>}, {pipeline_mode = #tpu.pipeline_mode<synchronous>, transform_indices = @transform_3, window_bounds = array<i64: 2, 4, 512>}, {pipeline_mode = #tpu.pipeline_mode<synchronous>, transform_indices = @transform_4, window_bounds = array<i64: 2, 32, 512>}, {pipeline_mode = #tpu.pipeline_mode<synchronous>, transform_indices = @transform_5, window_bounds = array<i64: 2, 4, 256>}, {pipeline_mode = #tpu.pipeline_mode<synchronous>, transform_indices = @transform_6, window_bounds = array<i64: 2, 32, 256>}, {pipeline_mode = #tpu.pipeline_mode<synchronous>, transform_indices = @transform_7, window_bounds = array<i64: 32, 512>}, {pipeline_mode = #tpu.pipeline_mode<synchronous>, transform_indices = @transform_8, window_bounds = array<i64: 32, 256>}, {pipeline_mode = #tpu.pipeline_mode<synchronous>, transform_indices = @transform_9, window_bounds = array<i64: 32, 64>}, {pipeline_mode = #tpu.pipeline_mode<synchronous>, transform_indices = @transform_10, window_bounds = array<i64: 32, 32>}, {transform_indices = @transform_11, window_bounds = array<i64: 1, 32, 32>}]} {
    %c0_i32 = arith.constant 0 : i32
    %0 = arith.cmpi eq, %arg0, %c0_i32 : i32
    %1 = arith.extui %0 : i1 to i32
    %c0_i32_0 = arith.constant 0 : i32
    %2 = arith.cmpi ne, %1, %c0_i32_0 : i32
    scf.if %2 {
      %c0_65 = arith.constant 0 : index
      %c0_66 = arith.constant 0 : index
      %113 = vector.load %arg2[%c0_65, %c0_66] : memref<32x32xf32, #tpu.memory_space<vmem>>, vector<32x32xf32>
      %c0_67 = arith.constant 0 : index
      %c0_68 = arith.constant 0 : index
      %114 = vector.load %arg13[%c0_67, %c0_68] : memref<32x32xf32, #tpu.memory_space<vmem>>, vector<32x32xf32>
      tpu.vector_store %arg13[%c0_67, %c0_68], %113 {strides = array<i32>} : memref<32x32xf32, #tpu.memory_space<vmem>>, vector<32x32xf32>,
    } else {
    }
    %c0 = arith.constant 0 : index
    %c0_1 = arith.constant 0 : index
    %c0_2 = arith.constant 0 : index
    %3 = vector.load %arg1[%c0, %c0_1, %c0_2] : memref<1x32x4xf32, #tpu.memory_space<vmem>>, vector<1x32x4xf32>
    %4 = vector.shape_cast %3 : vector<1x32x4xf32> to vector<32x4xf32>
    %c0_3 = arith.constant 0 : index
    %c0_4 = arith.constant 0 : index
    %5 = vector.load %arg13[%c0_3, %c0_4] : memref<32x32xf32, #tpu.memory_space<vmem>>, vector<32x32xf32>
    %c0_5 = arith.constant 0 : index
    %c0_6 = arith.constant 0 : index
    %c0_7 = arith.constant 0 : index
    %6 = vector.load %arg3[%c0_5, %c0_6, %c0_7] : memref<1x16x16xf32, #tpu.memory_space<vmem>>, vector<1x16x16xf32>
    %7 = vector.shape_cast %6 : vector<1x16x16xf32> to vector<16x16xf32>
    %8 = vector.extract_strided_slice %4 {offsets = [0, 0], sizes = [16, 4], strides = [1, 1]} : vector<32x4xf32> to vector<16x4xf32>
    %cst = arith.constant dense<0.000000e+00> : vector<16x4xf32>
    %9 = tpu.matmul %7, %8, %cst {dimension_numbers = #tpu.dot_dimension_numbers<[1], [0], [0], [1], [0, 0, 1, 1], [], []>} : vector<16x16xf32>, vector<16x4xf32>, vector<16x4xf32> -> vector<16x4xf32>
    %10 = vector.extract_strided_slice %4 {offsets = [16, 0], sizes = [16, 4], strides = [1, 1]} : vector<32x4xf32> to vector<16x4xf32>
    %cst_8 = arith.constant dense<0.000000e+00> : vector<16x4xf32>
    %11 = tpu.matmul %7, %10, %cst_8 {dimension_numbers = #tpu.dot_dimension_numbers<[1], [0], [0], [1], [0, 0, 1, 1], [], []>} : vector<16x16xf32>, vector<16x4xf32>, vector<16x4xf32> -> vector<16x4xf32>
    %12 = tpu.concatenate %9, %11 in 0 : vector<16x4xf32>, vector<16x4xf32> -> vector<32x4xf32>
    %c0_9 = arith.constant 0 : index
    %c0_10 = arith.constant 0 : index
    %c0_11 = arith.constant 0 : index
    %13 = vector.load %arg4[%c0_9, %c0_10, %c0_11] : memref<2x4x512xf32, #tpu.memory_space<vmem>>, vector<1x4x512xf32>
    %14 = vector.shape_cast %13 : vector<1x4x512xf32> to vector<4x512xf32>
    %cst_12 = arith.constant dense<0.000000e+00> : vector<32x512xf32>
    %15 = tpu.matmul %4, %14, %cst_12 {dimension_numbers = #tpu.dot_dimension_numbers<[1], [0], [0], [1], [0, 0, 1, 1], [], []>} : vector<32x4xf32>, vector<4x512xf32>, vector<32x512xf32> -> vector<32x512xf32>
    %c0_13 = arith.constant 0 : index
    %c0_14 = arith.constant 0 : index
    %c0_15 = arith.constant 0 : index
    %16 = vector.load %arg5[%c0_13, %c0_14, %c0_15] : memref<2x32x512xf32, #tpu.memory_space<vmem>>, vector<1x32x512xf32>
    %17 = vector.shape_cast %16 : vector<1x32x512xf32> to vector<32x512xf32>
    %cst_16 = arith.constant dense<0.000000e+00> : vector<32x512xf32>
    %18 = tpu.matmul %5, %17, %cst_16 {dimension_numbers = #tpu.dot_dimension_numbers<[1], [0], [0], [1], [0, 0, 1, 1], [], []>} : vector<32x32xf32>, vector<32x512xf32>, vector<32x512xf32> -> vector<32x512xf32>
    %19 = arith.addf %15, %18 : vector<32x512xf32>
    %c0_17 = arith.constant 0 : index
    %c0_18 = arith.constant 0 : index
    %c0_19 = arith.constant 0 : index
    %20 = vector.load %arg3[%c0_17, %c0_18, %c0_19] : memref<1x16x16xf32, #tpu.memory_space<vmem>>, vector<1x16x16xf32>
    %21 = vector.shape_cast %20 : vector<1x16x16xf32> to vector<16x16xf32>
    %22 = vector.extract_strided_slice %5 {offsets = [0, 0], sizes = [16, 32], strides = [1, 1]} : vector<32x32xf32> to vector<16x32xf32>
    %cst_20 = arith.constant dense<0.000000e+00> : vector<16x32xf32>
    %23 = tpu.matmul %21, %22, %cst_20 {dimension_numbers = #tpu.dot_dimension_numbers<[1], [0], [0], [1], [0, 0, 1, 1], [], []>} : vector<16x16xf32>, vector<16x32xf32>, vector<16x32xf32> -> vector<16x32xf32>
    %24 = vector.extract_strided_slice %5 {offsets = [16, 0], sizes = [16, 32], strides = [1, 1]} : vector<32x32xf32> to vector<16x32xf32>
    %cst_21 = arith.constant dense<0.000000e+00> : vector<16x32xf32>
    %25 = tpu.matmul %21, %24, %cst_21 {dimension_numbers = #tpu.dot_dimension_numbers<[1], [0], [0], [1], [0, 0, 1, 1], [], []>} : vector<16x16xf32>, vector<16x32xf32>, vector<16x32xf32> -> vector<16x32xf32>
    %26 = tpu.concatenate %23, %25 in 0 : vector<16x32xf32>, vector<16x32xf32> -> vector<32x32xf32>
    %c1 = arith.constant 1 : index
    %c0_22 = arith.constant 0 : index
    %c0_23 = arith.constant 0 : index
    %27 = vector.load %arg4[%c1, %c0_22, %c0_23] : memref<2x4x512xf32, #tpu.memory_space<vmem>>, vector<1x4x512xf32>
    %28 = vector.shape_cast %27 : vector<1x4x512xf32> to vector<4x512xf32>
    %cst_24 = arith.constant dense<0.000000e+00> : vector<32x512xf32>
    %29 = tpu.matmul %12, %28, %cst_24 {dimension_numbers = #tpu.dot_dimension_numbers<[1], [0], [0], [1], [0, 0, 1, 1], [], []>} : vector<32x4xf32>, vector<4x512xf32>, vector<32x512xf32> -> vector<32x512xf32>
    %c1_25 = arith.constant 1 : index
    %c0_26 = arith.constant 0 : index
    %c0_27 = arith.constant 0 : index
    %30 = vector.load %arg5[%c1_25, %c0_26, %c0_27] : memref<2x32x512xf32, #tpu.memory_space<vmem>>, vector<1x32x512xf32>
    %31 = vector.shape_cast %30 : vector<1x32x512xf32> to vector<32x512xf32>
    %cst_28 = arith.constant dense<0.000000e+00> : vector<32x512xf32>
    %32 = tpu.matmul %26, %31, %cst_28 {dimension_numbers = #tpu.dot_dimension_numbers<[1], [0], [0], [1], [0, 0, 1, 1], [], []>} : vector<32x32xf32>, vector<32x512xf32>, vector<32x512xf32> -> vector<32x512xf32>
    %33 = arith.addf %29, %32 : vector<32x512xf32>
    %34 = arith.addf %19, %33 : vector<32x512xf32>
    %c0_29 = arith.constant 0 : index
    %c0_30 = arith.constant 0 : index
    %35 = vector.load %arg8[%c0_29, %c0_30] : memref<32x512xf32, #tpu.memory_space<vmem>>, vector<32x512xf32>
    %c0_31 = arith.constant 0 : index
    %c0_32 = arith.constant 0 : index
    %36 = vector.load %arg10[%c0_31, %c0_32] : memref<32x64xf32, #tpu.memory_space<vmem>>, vector<32x64xf32>
    %37 = arith.mulf %35, %34 : vector<32x512xf32>
    %38 = vector.extract_strided_slice %37 {offsets = [0, 0], sizes = [32, 64], strides = [1, 1]} : vector<32x512xf32> to vector<32x64xf32>
    %39 = arith.addf %36, %38 : vector<32x64xf32>
    %40 = vector.extract_strided_slice %37 {offsets = [0, 64], sizes = [32, 64], strides = [1, 1]} : vector<32x512xf32> to vector<32x64xf32>
    %41 = arith.addf %39, %40 : vector<32x64xf32>
    %42 = vector.extract_strided_slice %37 {offsets = [0, 128], sizes = [32, 64], strides = [1, 1]} : vector<32x512xf32> to vector<32x64xf32>
    %43 = arith.addf %41, %42 : vector<32x64xf32>
    %44 = vector.extract_strided_slice %37 {offsets = [0, 192], sizes = [32, 64], strides = [1, 1]} : vector<32x512xf32> to vector<32x64xf32>
    %45 = arith.addf %43, %44 : vector<32x64xf32>
    %46 = vector.extract_strided_slice %37 {offsets = [0, 256], sizes = [32, 64], strides = [1, 1]} : vector<32x512xf32> to vector<32x64xf32>
    %47 = arith.addf %45, %46 : vector<32x64xf32>
    %48 = vector.extract_strided_slice %37 {offsets = [0, 320], sizes = [32, 64], strides = [1, 1]} : vector<32x512xf32> to vector<32x64xf32>
    %49 = arith.addf %47, %48 : vector<32x64xf32>
    %50 = vector.extract_strided_slice %37 {offsets = [0, 384], sizes = [32, 64], strides = [1, 1]} : vector<32x512xf32> to vector<32x64xf32>
    %51 = arith.addf %49, %50 : vector<32x64xf32>
    %52 = vector.extract_strided_slice %37 {offsets = [0, 448], sizes = [32, 64], strides = [1, 1]} : vector<32x512xf32> to vector<32x64xf32>
    %53 = arith.addf %51, %52 : vector<32x64xf32>
    %54 = arith.negf %53 : vector<32x64xf32>
    %55 = math.exp %54 : vector<32x64xf32>
    %cst_33 = arith.constant 1.000000e+00 : f32
    %56 = vector.broadcast %cst_33 : f32 to vector<32x64xf32>
    %57 = arith.addf %56, %55 : vector<32x64xf32>
    %58 = arith.divf %56, %57 : vector<32x64xf32>
    %59 = vector.extract_strided_slice %58 {offsets = [0, 0], sizes = [32, 32], strides = [1, 1]} : vector<32x64xf32> to vector<32x32xf32>
    %60 = vector.extract_strided_slice %58 {offsets = [0, 32], sizes = [32, 32], strides = [1, 1]} : vector<32x64xf32> to vector<32x32xf32>
    %61 = arith.mulf %59, %5 : vector<32x32xf32>
    %c0_34 = arith.constant 0 : index
    %c0_35 = arith.constant 0 : index
    %c0_36 = arith.constant 0 : index
    %62 = vector.load %arg6[%c0_34, %c0_35, %c0_36] : memref<2x4x256xf32, #tpu.memory_space<vmem>>, vector<1x4x256xf32>
    %63 = vector.shape_cast %62 : vector<1x4x256xf32> to vector<4x256xf32>
    %cst_37 = arith.constant dense<0.000000e+00> : vector<32x256xf32>
    %64 = tpu.matmul %4, %63, %cst_37 {dimension_numbers = #tpu.dot_dimension_numbers<[1], [0], [0], [1], [0, 0, 1, 1], [], []>} : vector<32x4xf32>, vector<4x256xf32>, vector<32x256xf32> -> vector<32x256xf32>
    %c0_38 = arith.constant 0 : index
    %c0_39 = arith.constant 0 : index
    %c0_40 = arith.constant 0 : index
    %65 = vector.load %arg7[%c0_38, %c0_39, %c0_40] : memref<2x32x256xf32, #tpu.memory_space<vmem>>, vector<1x32x256xf32>
    %66 = vector.shape_cast %65 : vector<1x32x256xf32> to vector<32x256xf32>
    %cst_41 = arith.constant dense<0.000000e+00> : vector<32x256xf32>
    %67 = tpu.matmul %61, %66, %cst_41 {dimension_numbers = #tpu.dot_dimension_numbers<[1], [0], [0], [1], [0, 0, 1, 1], [], []>} : vector<32x32xf32>, vector<32x256xf32>, vector<32x256xf32> -> vector<32x256xf32>
    %68 = arith.addf %64, %67 : vector<32x256xf32>
    %c0_42 = arith.constant 0 : index
    %c0_43 = arith.constant 0 : index
    %c0_44 = arith.constant 0 : index
    %69 = vector.load %arg3[%c0_42, %c0_43, %c0_44] : memref<1x16x16xf32, #tpu.memory_space<vmem>>, vector<1x16x16xf32>
    %70 = vector.shape_cast %69 : vector<1x16x16xf32> to vector<16x16xf32>
    %71 = vector.extract_strided_slice %61 {offsets = [0, 0], sizes = [16, 32], strides = [1, 1]} : vector<32x32xf32> to vector<16x32xf32>
    %cst_45 = arith.constant dense<0.000000e+00> : vector<16x32xf32>
    %72 = tpu.matmul %70, %71, %cst_45 {dimension_numbers = #tpu.dot_dimension_numbers<[1], [0], [0], [1], [0, 0, 1, 1], [], []>} : vector<16x16xf32>, vector<16x32xf32>, vector<16x32xf32> -> vector<16x32xf32>
    %73 = vector.extract_strided_slice %61 {offsets = [16, 0], sizes = [16, 32], strides = [1, 1]} : vector<32x32xf32> to vector<16x32xf32>
    %cst_46 = arith.constant dense<0.000000e+00> : vector<16x32xf32>
    %74 = tpu.matmul %70, %73, %cst_46 {dimension_numbers = #tpu.dot_dimension_numbers<[1], [0], [0], [1], [0, 0, 1, 1], [], []>} : vector<16x16xf32>, vector<16x32xf32>, vector<16x32xf32> -> vector<16x32xf32>
    %75 = tpu.concatenate %72, %74 in 0 : vector<16x32xf32>, vector<16x32xf32> -> vector<32x32xf32>
    %c1_47 = arith.constant 1 : index
    %c0_48 = arith.constant 0 : index
    %c0_49 = arith.constant 0 : index
    %76 = vector.load %arg6[%c1_47, %c0_48, %c0_49] : memref<2x4x256xf32, #tpu.memory_space<vmem>>, vector<1x4x256xf32>
    %77 = vector.shape_cast %76 : vector<1x4x256xf32> to vector<4x256xf32>
    %cst_50 = arith.constant dense<0.000000e+00> : vector<32x256xf32>
    %78 = tpu.matmul %12, %77, %cst_50 {dimension_numbers = #tpu.dot_dimension_numbers<[1], [0], [0], [1], [0, 0, 1, 1], [], []>} : vector<32x4xf32>, vector<4x256xf32>, vector<32x256xf32> -> vector<32x256xf32>
    %c1_51 = arith.constant 1 : index
    %c0_52 = arith.constant 0 : index
    %c0_53 = arith.constant 0 : index
    %79 = vector.load %arg7[%c1_51, %c0_52, %c0_53] : memref<2x32x256xf32, #tpu.memory_space<vmem>>, vector<1x32x256xf32>
    %80 = vector.shape_cast %79 : vector<1x32x256xf32> to vector<32x256xf32>
    %cst_54 = arith.constant dense<0.000000e+00> : vector<32x256xf32>
    %81 = tpu.matmul %75, %80, %cst_54 {dimension_numbers = #tpu.dot_dimension_numbers<[1], [0], [0], [1], [0, 0, 1, 1], [], []>} : vector<32x32xf32>, vector<32x256xf32>, vector<32x256xf32> -> vector<32x256xf32>
    %82 = arith.addf %78, %81 : vector<32x256xf32>
    %83 = arith.addf %68, %82 : vector<32x256xf32>
    %c0_55 = arith.constant 0 : index
    %c0_56 = arith.constant 0 : index
    %84 = vector.load %arg9[%c0_55, %c0_56] : memref<32x256xf32, #tpu.memory_space<vmem>>, vector<32x256xf32>
    %c0_57 = arith.constant 0 : index
    %c0_58 = arith.constant 0 : index
    %85 = vector.load %arg11[%c0_57, %c0_58] : memref<32x32xf32, #tpu.memory_space<vmem>>, vector<32x32xf32>
    %86 = arith.mulf %84, %83 : vector<32x256xf32>
    %87 = vector.extract_strided_slice %86 {offsets = [0, 0], sizes = [32, 32], strides = [1, 1]} : vector<32x256xf32> to vector<32x32xf32>
    %88 = arith.addf %85, %87 : vector<32x32xf32>
    %89 = vector.extract_strided_slice %86 {offsets = [0, 32], sizes = [32, 32], strides = [1, 1]} : vector<32x256xf32> to vector<32x32xf32>
    %90 = arith.addf %88, %89 : vector<32x32xf32>
    %91 = vector.extract_strided_slice %86 {offsets = [0, 64], sizes = [32, 32], strides = [1, 1]} : vector<32x256xf32> to vector<32x32xf32>
    %92 = arith.addf %90, %91 : vector<32x32xf32>
    %93 = vector.extract_strided_slice %86 {offsets = [0, 96], sizes = [32, 32], strides = [1, 1]} : vector<32x256xf32> to vector<32x32xf32>
    %94 = arith.addf %92, %93 : vector<32x32xf32>
    %95 = vector.extract_strided_slice %86 {offsets = [0, 128], sizes = [32, 32], strides = [1, 1]} : vector<32x256xf32> to vector<32x32xf32>
    %96 = arith.addf %94, %95 : vector<32x32xf32>
    %97 = vector.extract_strided_slice %86 {offsets = [0, 160], sizes = [32, 32], strides = [1, 1]} : vector<32x256xf32> to vector<32x32xf32>
    %98 = arith.addf %96, %97 : vector<32x32xf32>
    %99 = vector.extract_strided_slice %86 {offsets = [0, 192], sizes = [32, 32], strides = [1, 1]} : vector<32x256xf32> to vector<32x32xf32>
    %100 = arith.addf %98, %99 : vector<32x32xf32>
    %101 = vector.extract_strided_slice %86 {offsets = [0, 224], sizes = [32, 32], strides = [1, 1]} : vector<32x256xf32> to vector<32x32xf32>
    %102 = arith.addf %100, %101 : vector<32x32xf32>
    %103 = math.tanh %102 : vector<32x32xf32>
    %104 = arith.mulf %60, %5 : vector<32x32xf32>
    %cst_59 = arith.constant 1.000000e+00 : f32
    %105 = vector.broadcast %cst_59 : f32 to vector<32x32xf32>
    %106 = arith.subf %105, %60 : vector<32x32xf32>
    %107 = arith.mulf %106, %103 : vector<32x32xf32>
    %108 = arith.addf %104, %107 : vector<32x32xf32>
    %c0_60 = arith.constant 0 : index
    %c0_61 = arith.constant 0 : index
    %109 = vector.load %arg13[%c0_60, %c0_61] : memref<32x32xf32, #tpu.memory_space<vmem>>, vector<32x32xf32>
    tpu.vector_store %arg13[%c0_60, %c0_61], %108 {strides = array<i32>} : memref<32x32xf32, #tpu.memory_space<vmem>>, vector<32x32xf32>,
    %c0_62 = arith.constant 0 : index
    %c0_63 = arith.constant 0 : index
    %c0_64 = arith.constant 0 : index
    %110 = vector.load %arg12[%c0_62, %c0_63, %c0_64] : memref<1x32x32xf32, #tpu.memory_space<vmem>>, vector<1x32x32xf32>
    %111 = vector.shape_cast %110 : vector<1x32x32xf32> to vector<32x32xf32>
    %112 = vector.shape_cast %108 : vector<32x32xf32> to vector<1x32x32xf32>
    tpu.vector_store %arg12[%c0_62, %c0_63, %c0_64], %112 {strides = array<i32>} : memref<1x32x32xf32, #tpu.memory_space<vmem>>, vector<1x32x32xf32>,
    return
  }
  func.func @transform_0(%arg0: i32) -> (i32, i32, i32) {
    %c0_i32 = arith.constant 0 : i32
    %c0_i32_0 = arith.constant 0 : i32
    %c0_i32_1 = arith.constant 0 : i32
    return %arg0, %c0_i32, %c0_i32_0 : i32, i32, i32
  }
  func.func @transform_1(%arg0: i32) -> (i32, i32) {
    %c0_i32 = arith.constant 0 : i32
    %c0_i32_0 = arith.constant 0 : i32
    %c0_i32_1 = arith.constant 0 : i32
    return %c0_i32, %c0_i32_0 : i32, i32
  }
  func.func @transform_2(%arg0: i32) -> (i32, i32, i32) {
    %c0_i32 = arith.constant 0 : i32
    %c0_i32_0 = arith.constant 0 : i32
    %c0_i32_1 = arith.constant 0 : i32
    %c0_i32_2 = arith.constant 0 : i32
    return %c0_i32, %c0_i32_0, %c0_i32_1 : i32, i32, i32
  }
  func.func @transform_3(%arg0: i32) -> (i32, i32, i32) {
    %c0_i32 = arith.constant 0 : i32
    %c0_i32_0 = arith.constant 0 : i32
    %c0_i32_1 = arith.constant 0 : i32
    %c0_i32_2 = arith.constant 0 : i32
    return %c0_i32, %c0_i32_0, %c0_i32_1 : i32, i32, i32
  }
  func.func @transform_4(%arg0: i32) -> (i32, i32, i32) {
    %c0_i32 = arith.constant 0 : i32
    %c0_i32_0 = arith.constant 0 : i32
    %c0_i32_1 = arith.constant 0 : i32
    %c0_i32_2 = arith.constant 0 : i32
    return %c0_i32, %c0_i32_0, %c0_i32_1 : i32, i32, i32
  }
  func.func @transform_5(%arg0: i32) -> (i32, i32, i32) {
    %c0_i32 = arith.constant 0 : i32
    %c0_i32_0 = arith.constant 0 : i32
    %c0_i32_1 = arith.constant 0 : i32
    %c0_i32_2 = arith.constant 0 : i32
    return %c0_i32, %c0_i32_0, %c0_i32_1 : i32, i32, i32
  }
  func.func @transform_6(%arg0: i32) -> (i32, i32, i32) {
    %c0_i32 = arith.constant 0 : i32
    %c0_i32_0 = arith.constant 0 : i32
    %c0_i32_1 = arith.constant 0 : i32
    %c0_i32_2 = arith.constant 0 : i32
    return %c0_i32, %c0_i32_0, %c0_i32_1 : i32, i32, i32
  }
  func.func @transform_7(%arg0: i32) -> (i32, i32) {
    %c0_i32 = arith.constant 0 : i32
    %c0_i32_0 = arith.constant 0 : i32
    %c0_i32_1 = arith.constant 0 : i32
    return %c0_i32, %c0_i32_0 : i32, i32
  }
  func.func @transform_8(%arg0: i32) -> (i32, i32) {
    %c0_i32 = arith.constant 0 : i32
    %c0_i32_0 = arith.constant 0 : i32
    %c0_i32_1 = arith.constant 0 : i32
    return %c0_i32, %c0_i32_0 : i32, i32
  }
  func.func @transform_9(%arg0: i32) -> (i32, i32) {
    %c0_i32 = arith.constant 0 : i32
    %c0_i32_0 = arith.constant 0 : i32
    %c0_i32_1 = arith.constant 0 : i32
    return %c0_i32, %c0_i32_0 : i32, i32
  }
  func.func @transform_10(%arg0: i32) -> (i32, i32) {
    %c0_i32 = arith.constant 0 : i32
    %c0_i32_0 = arith.constant 0 : i32
    %c0_i32_1 = arith.constant 0 : i32
    return %c0_i32, %c0_i32_0 : i32, i32
  }
  func.func @transform_11(%arg0: i32) -> (i32, i32, i32) {
    %c0_i32 = arith.constant 0 : i32
    %c0_i32_0 = arith.constant 0 : i32
    %c0_i32_1 = arith.constant 0 : i32
    return %arg0, %c0_i32, %c0_i32_0 : i32, i32, i32
  }
}

</mosaic_0001>

<llo_original>
// kernel: agcrn_cell_sequence.1
$region0: #{agcrn_cell_sequence.1}
  #allocation0 [shape = 'u32[]', space=smem, size = 0x4, offset = 0x4, fixed_abs, tag = 'smem constant byte address 0x4 - core index']
  #allocation1 [shape = 'u32[144,128]{1,0:T(1,128)}', space=vmem, size = 0x12000, scoped, tag = 'internal scratch']
  #allocation2 [shape = 'f32[32,32]{1,0:T(8,128)}', space=vmem, size = 0x4000, scoped, tag = 'scratch operand']
  %s0 = inlined_call_operand.vmem [shape: f32[8,32,4], index: 0, kind: input, shape index: {}]
  %s1 = inlined_call_operand.vmem [shape: f32[32,32], index: 1, kind: input, shape index: {}]
  %s2 = inlined_call_operand.vmem [shape: f32[1,16,16], index: 2, kind: input, shape index: {}]
  %s3 = inlined_call_operand.vmem [shape: f32[2,4,512], index: 3, kind: input, shape index: {}]
  %s4 = inlined_call_operand.vmem [shape: f32[2,32,512], index: 4, kind: input, shape index: {}]
  %s5 = inlined_call_operand.vmem [shape: f32[2,4,256], index: 5, kind: input, shape index: {}]
  %s6 = inlined_call_operand.vmem [shape: f32[2,32,256], index: 6, kind: input, shape index: {}]
  %s7 = inlined_call_operand.vmem [shape: f32[32,512], index: 7, kind: input, shape index: {}]
  %s8 = inlined_call_operand.vmem [shape: f32[32,256], index: 8, kind: input, shape index: {}]
  %s9 = inlined_call_operand.vmem [shape: f32[32,64], index: 9, kind: input, shape index: {}]
  %s10 = inlined_call_operand.vmem [shape: f32[32,32], index: 10, kind: input, shape index: {}]
  %s11 = inlined_call_operand.vmem [shape: f32[8,32,32], index: 11, kind: output, shape index: {}]
  %s12 = sld [smem:[#allocation0]]
  $region81: #{agcrn_cell_sequence.1} parent=0
    _
  %s14 = ssub.s32 1, %s12
  %s15 = scalar_select 0, %s14, %s12
  loop: start=0, step=1, limit=10
  $region2: #{agcrn_cell_sequence.1} parent=0 // loop_pre_header
    _
  $region3: #{agcrn_cell_sequence.1} parent=0 // loop_header
    %s17 = sphi 0, %s21
    %p18 = scmp.ge.s32.totalorder %s17, 10
    %s27 = sphi 0, %s29
    %s30 = sphi 0, %s27
    %s31 = sphi 0, %s30
    %s47 = sphi 0, %s31
    %s51 = sphi 0, %s51
    %s53 = sphi 0, %s51
    %s54 = sphi 0, %s53
    %s68 = sphi 0, %s54
    %s72 = sphi 0, %s72
    %s74 = sphi 0, %s72
    %s75 = sphi 0, %s74
    %s89 = sphi 0, %s75
    %s93 = sphi 0, %s93
    %s95 = sphi 0, %s93
    %s96 = sphi 0, %s95
    %s110 = sphi 0, %s96
    %s114 = sphi 0, %s114
    %s116 = sphi 0, %s114
    %s117 = sphi 0, %s116
    %s131 = sphi 0, %s117
    %s135 = sphi 0, %s135
    %s137 = sphi 0, %s135
    %s138 = sphi 0, %s137
    %s152 = sphi 0, %s138
    %s156 = sphi 0, %s156
    %s158 = sphi 0, %s156
    %s159 = sphi 0, %s158
    %s173 = sphi 0, %s159
    %s177 = sphi 0, %s177
    %s179 = sphi 0, %s177
    %s180 = sphi 0, %s179
    %s194 = sphi 0, %s180
    %s198 = sphi 0, %s198
    %s200 = sphi 0, %s198
    %s201 = sphi 0, %s200
    %s215 = sphi 0, %s201
    %s219 = sphi 0, %s219
    %s221 = sphi 0, %s219
    %s222 = sphi 0, %s221
    %s236 = sphi 0, %s222
    %s240 = sphi 0, %s240
    %s242 = sphi 0, %s240
    %s243 = sphi 0, %s242
    %s257 = sphi 0, %s243
    %s263 = sphi 0, %s265
    %s266 = sphi 0, %s263
    %s267 = sphi 0, %s266
    %s283 = sphi 0, %s267
  $region4: #{agcrn_cell_sequence.1} parent=0 // loop_header_branch
    %20 = sbr.rel (%p18) target = $region8
  $region5: #{agcrn_cell_sequence.1} parent=0 // loop_body
    %s22 = ssub.s32 %s17, 1
    %s23 = ssub.s32 %s17, 2
    %s24 = sadd.s32 %s17, 1
    %s25 = ssub.s32 %s17, %s24
    %p26 = scmp.eq.s32.totalorder %s25, 0
    %s28 = sadd.s32 %s27, 1
    %s29 = scalar_select %p26, %s27, %s28
    %p32 = pneg %p26
    %p33 = scmp.eq.s32.totalorder %s17, 7
    %p34 = por %p32, %p33
    %p35 = scmp.ne.s32.totalorder %s27, %s30
    %p36 = scmp.eq.s32.totalorder %s17, 0
    %p37 = por %p35, %p36
    %p38 = scmp.ne.s32.totalorder %s27, %s30
    %p39 = scmp.eq.s32.totalorder %s22, 7
    %p40 = por %p38, %p39
    %p41 = scmp.ne.s32.totalorder %s30, %s31
    %p42 = scmp.eq.s32.totalorder %s22, 0
    %p43 = por %p41, %p42
    %p44 = scmp.ne.s32.totalorder %s30, %s31
    %p45 = scmp.eq.s32.totalorder %s23, 7
    %p46 = por %p44, %p45
    %p48 = scmp.ne.s32.totalorder %s31, %s47
    %p49 = scmp.eq.s32.totalorder %s23, 0
    %p50 = por %p48, %p49
    %s52 = sadd.s32 %s51, 1
    %p55 = scmp.eq.s32.totalorder %s17, 7
    %p56 = scmp.ne.s32.totalorder %s51, %s53
    %p57 = scmp.eq.s32.totalorder %s17, 0
    %p58 = por %p56, %p57
    %p59 = scmp.ne.s32.totalorder %s51, %s53
    %p60 = scmp.eq.s32.totalorder %s22, 7
    %p61 = por %p59, %p60
    %p62 = scmp.ne.s32.totalorder %s53, %s54
    %p63 = scmp.eq.s32.totalorder %s22, 0
    %p64 = por %p62, %p63
    %p65 = scmp.ne.s32.totalorder %s53, %s54
    %p66 = scmp.eq.s32.totalorder %s23, 7
    %p67 = por %p65, %p66
    %p69 = scmp.ne.s32.totalorder %s54, %s68
    %p70 = scmp.eq.s32.totalorder %s23, 0
    %p71 = por %p69, %p70
    %s73 = sadd.s32 %s72, 1
    %p76 = scmp.eq.s32.totalorder %s17, 7
    %p77 = scmp.ne.s32.totalorder %s72, %s74
    %p78 = scmp.eq.s32.totalorder %s17, 0
    %p79 = por %p77, %p78
    %p80 = scmp.ne.s32.totalorder %s72, %s74
    %p81 = scmp.eq.s32.totalorder %s22, 7
    %p82 = por %p80, %p81
    %p83 = scmp.ne.s32.totalorder %s74, %s75
    %p84 = scmp.eq.s32.totalorder %s22, 0
    %p85 = por %p83, %p84
    %p86 = scmp.ne.s32.totalorder %s74, %s75
    %p87 = scmp.eq.s32.totalorder %s23, 7
    %p88 = por %p86, %p87
    %p90 = scmp.ne.s32.totalorder %s75, %s89
    %p91 = scmp.eq.s32.totalorder %s23, 0
    %p92 = por %p90, %p91
    %s94 = sadd.s32 %s93, 1
    %p97 = scmp.eq.s32.totalorder %s17, 7
    %p98 = scmp.ne.s32.totalorder %s93, %s95
    %p99 = scmp.eq.s32.totalorder %s17, 0
    %p100 = por %p98, %p99
    %p101 = scmp.ne.s32.totalorder %s93, %s95
    %p102 = scmp.eq.s32.totalorder %s22, 7
    %p103 = por %p101, %p102
    %p104 = scmp.ne.s32.totalorder %s95, %s96
    %p105 = scmp.eq.s32.totalorder %s22, 0
    %p106 = por %p104, %p105
    %p107 = scmp.ne.s32.totalorder %s95, %s96
    %p108 = scmp.eq.s32.totalorder %s23, 7
    %p109 = por %p107, %p108
    %p111 = scmp.ne.s32.totalorder %s96, %s110
    %p112 = scmp.eq.s32.totalorder %s23, 0
    %p113 = por %p111, %p112
    %s115 = sadd.s32 %s114, 1
    %p118 = scmp.eq.s32.totalorder %s17, 7
    %p119 = scmp.ne.s32.totalorder %s114, %s116
    %p120 = scmp.eq.s32.totalorder %s17, 0
    %p121 = por %p119, %p120
    %p122 = scmp.ne.s32.totalorder %s114, %s116
    %p123 = scmp.eq.s32.totalorder %s22, 7
    %p124 = por %p122, %p123
    %p125 = scmp.ne.s32.totalorder %s116, %s117
    %p126 = scmp.eq.s32.totalorder %s22, 0
    %p127 = por %p125, %p126
    %p128 = scmp.ne.s32.totalorder %s116, %s117
    %p129 = scmp.eq.s32.totalorder %s23, 7
    %p130 = por %p128, %p129
    %p132 = scmp.ne.s32.totalorder %s117, %s131
    %p133 = scmp.eq.s32.totalorder %s23, 0
    %p134 = por %p132, %p133
    %s136 = sadd.s32 %s135, 1
    %p139 = scmp.eq.s32.totalorder %s17, 7
    %p140 = scmp.ne.s32.totalorder %s135, %s137
    %p141 = scmp.eq.s32.totalorder %s17, 0
    %p142 = por %p140, %p141
    %p143 = scmp.ne.s32.totalorder %s135, %s137
    %p144 = scmp.eq.s32.totalorder %s22, 7
    %p145 = por %p143, %p144
    %p146 = scmp.ne.s32.totalorder %s137, %s138
    %p147 = scmp.eq.s32.totalorder %s22, 0
    %p148 = por %p146, %p147
    %p149 = scmp.ne.s32.totalorder %s137, %s138
    %p150 = scmp.eq.s32.totalorder %s23, 7
    %p151 = por %p149, %p150
    %p153 = scmp.ne.s32.totalorder %s138, %s152
    %p154 = scmp.eq.s32.totalorder %s23, 0
    %p155 = por %p153, %p154
    %s157 = sadd.s32 %s156, 1
    %p160 = scmp.eq.s32.totalorder %s17, 7
    %p161 = scmp.ne.s32.totalorder %s156, %s158
    %p162 = scmp.eq.s32.totalorder %s17, 0
    %p163 = por %p161, %p162
    %p164 = scmp.ne.s32.totalorder %s156, %s158
    %p165 = scmp.eq.s32.totalorder %s22, 7
    %p166 = por %p164, %p165
    %p167 = scmp.ne.s32.totalorder %s158, %s159
    %p168 = scmp.eq.s32.totalorder %s22, 0
    %p169 = por %p167, %p168
    %p170 = scmp.ne.s32.totalorder %s158, %s159
    %p171 = scmp.eq.s32.totalorder %s23, 7
    %p172 = por %p170, %p171
    %p174 = scmp.ne.s32.totalorder %s159, %s173
    %p175 = scmp.eq.s32.totalorder %s23, 0
    %p176 = por %p174, %p175
    %s178 = sadd.s32 %s177, 1
    %p181 = scmp.eq.s32.totalorder %s17, 7
    %p182 = scmp.ne.s32.totalorder %s177, %s179
    %p183 = scmp.eq.s32.totalorder %s17, 0
    %p184 = por %p182, %p183
    %p185 = scmp.ne.s32.totalorder %s177, %s179
    %p186 = scmp.eq.s32.totalorder %s22, 7
    %p187 = por %p185, %p186
    %p188 = scmp.ne.s32.totalorder %s179, %s180
    %p189 = scmp.eq.s32.totalorder %s22, 0
    %p190 = por %p188, %p189
    %p191 = scmp.ne.s32.totalorder %s179, %s180
    %p192 = scmp.eq.s32.totalorder %s23, 7
    %p193 = por %p191, %p192
    %p195 = scmp.ne.s32.totalorder %s180, %s194
    %p196 = scmp.eq.s32.totalorder %s23, 0
    %p197 = por %p195, %p196
    %s199 = sadd.s32 %s198, 1
    %p202 = scmp.eq.s32.totalorder %s17, 7
    %p203 = scmp.ne.s32.totalorder %s198, %s200
    %p204 = scmp.eq.s32.totalorder %s17, 0
    %p205 = por %p203, %p204
    %p206 = scmp.ne.s32.totalorder %s198, %s200
    %p207 = scmp.eq.s32.totalorder %s22, 7
    %p208 = por %p206, %p207
    %p209 = scmp.ne.s32.totalorder %s200, %s201
    %p210 = scmp.eq.s32.totalorder %s22, 0
    %p211 = por %p209, %p210
    %p212 = scmp.ne.s32.totalorder %s200, %s201
    %p213 = scmp.eq.s32.totalorder %s23, 7
    %p214 = por %p212, %p213
    %p216 = scmp.ne.s32.totalorder %s201, %s215
    %p217 = scmp.eq.s32.totalorder %s23, 0
    %p218 = por %p216, %p217
    %s220 = sadd.s32 %s219, 1
    %p223 = scmp.eq.s32.totalorder %s17, 7
    %p224 = scmp.ne.s32.totalorder %s219, %s221
    %p225 = scmp.eq.s32.totalorder %s17, 0
    %p226 = por %p224, %p225
    %p227 = scmp.ne.s32.totalorder %s219, %s221
    %p228 = scmp.eq.s32.totalorder %s22, 7
    %p229 = por %p227, %p228
    %p230 = scmp.ne.s32.totalorder %s221, %s222
    %p231 = scmp.eq.s32.totalorder %s22, 0
    %p232 = por %p230, %p231
    %p233 = scmp.ne.s32.totalorder %s221, %s222
    %p234 = scmp.eq.s32.totalorder %s23, 7
    %p235 = por %p233, %p234
    %p237 = scmp.ne.s32.totalorder %s222, %s236
    %p238 = scmp.eq.s32.totalorder %s23, 0
    %p239 = por %p237, %p238
    %s241 = sadd.s32 %s240, 1
    %p244 = scmp.eq.s32.totalorder %s17, 7
    %p245 = scmp.ne.s32.totalorder %s240, %s242
    %p246 = scmp.eq.s32.totalorder %s17, 0
    %p247 = por %p245, %p246
    %p248 = scmp.ne.s32.totalorder %s240, %s242
    %p249 = scmp.eq.s32.totalorder %s22, 7
    %p250 = por %p248, %p249
    %p251 = scmp.ne.s32.totalorder %s242, %s243
    %p252 = scmp.eq.s32.totalorder %s22, 0
    %p253 = por %p251, %p252
    %p254 = scmp.ne.s32.totalorder %s242, %s243
    %p255 = scmp.eq.s32.totalorder %s23, 7
    %p256 = por %p254, %p255
    %p258 = scmp.ne.s32.totalorder %s243, %s257
    %p259 = scmp.eq.s32.totalorder %s23, 0
    %p260 = por %p258, %p259
    %s261 = ssub.s32 %s17, %s24
    %p262 = scmp.eq.s32.totalorder %s261, 0
    %s264 = sadd.s32 %s263, 1
    %s265 = scalar_select %p262, %s263, %s264
    %p268 = pneg %p262
    %p269 = scmp.eq.s32.totalorder %s17, 7
    %p270 = por %p268, %p269
    %p271 = scmp.ne.s32.totalorder %s263, %s266
    %p272 = scmp.eq.s32.totalorder %s17, 0
    %p273 = por %p271, %p272
    %p274 = scmp.ne.s32.totalorder %s263, %s266
    %p275 = scmp.eq.s32.totalorder %s22, 7
    %p276 = por %p274, %p275
    %p277 = scmp.ne.s32.totalorder %s266, %s267
    %p278 = scmp.eq.s32.totalorder %s22, 0
    %p279 = por %p277, %p278
    %p280 = scmp.ne.s32.totalorder %s266, %s267
    %p281 = scmp.eq.s32.totalorder %s23, 7
    %p282 = por %p280, %p281
    %p284 = scmp.ne.s32.totalorder %s267, %s283
    %p285 = scmp.eq.s32.totalorder %s23, 0
    %p286 = por %p284, %p285
    %p287 = scmp.le.s32.totalorder 1, %s17
    %p288 = scmp.lt.s32.totalorder %s17, 9
    %p289 = pnand %p287, %p288
    %p290 = pneg %p289
    // Predicated region
    $region9: #{agcrn_cell_sequence.1} parent=5 // pred_check
      _
    $region10: #{agcrn_cell_sequence.1} parent=5 // pred_check_branch
      %292 = sbr.rel (%p289) target = $region12
    $region11: #{agcrn_cell_sequence.1} parent=5 // pred_region
      %s293 = ssub.s32 %s17, 1
      // Predicated region
      $region13: #{agcrn_cell_sequence.1} parent=11 // pred_check
        %p294 = pneg %p64
      $region14: #{agcrn_cell_sequence.1} parent=11 // pred_check_branch
        %296 = sbr.rel (%p294) target = $region16
      $region15: #{agcrn_cell_sequence.1} parent=11 // pred_region
        _
      $region16: #{agcrn_cell_sequence.1} parent=11 // pred_fallthru
        _
      // Predicated region
      $region17: #{agcrn_cell_sequence.1} parent=11 // pred_check
        %p297 = pneg %p85
      $region18: #{agcrn_cell_sequence.1} parent=11 // pred_check_branch
        %299 = sbr.rel (%p297) target = $region20
      $region19: #{agcrn_cell_sequence.1} parent=11 // pred_region
        _
      $region20: #{agcrn_cell_sequence.1} parent=11 // pred_fallthru
        _
      // Predicated region
      $region21: #{agcrn_cell_sequence.1} parent=11 // pred_check
        %p300 = pneg %p106
      $region22: #{agcrn_cell_sequence.1} parent=11 // pred_check_branch
        %302 = sbr.rel (%p300) target = $region24
      $region23: #{agcrn_cell_sequence.1} parent=11 // pred_region
        _
      $region24: #{agcrn_cell_sequence.1} parent=11 // pred_fallthru
        _
      // Predicated region
      $region25: #{agcrn_cell_sequence.1} parent=11 // pred_check
        %p303 = pneg %p127
      $region26: #{agcrn_cell_sequence.1} parent=11 // pred_check_branch
        %305 = sbr.rel (%p303) target = $region28
      $region27: #{agcrn_cell_sequence.1} parent=11 // pred_region
        _
      $region28: #{agcrn_cell_sequence.1} parent=11 // pred_fallthru
        _
      // Predicated region
      $region29: #{agcrn_cell_sequence.1} parent=11 // pred_check
        %p306 = pneg %p148
      $region30: #{agcrn_cell_sequence.1} parent=11 // pred_check_branch
        %308 = sbr.rel (%p306) target = $region32
      $region31: #{agcrn_cell_sequence.1} parent=11 // pred_region
        _
      $region32: #{agcrn_cell_sequence.1} parent=11 // pred_fallthru
        _
      // Predicated region
      $region33: #{agcrn_cell_sequence.1} parent=11 // pred_check
        %p309 = pneg %p169
      $region34: #{agcrn_cell_sequence.1} parent=11 // pred_check_branch
        %311 = sbr.rel (%p309) target = $region36
      $region35: #{agcrn_cell_sequence.1} parent=11 // pred_region
        _
      $region36: #{agcrn_cell_sequence.1} parent=11 // pred_fallthru
        _
      // Predicated region
      $region37: #{agcrn_cell_sequence.1} parent=11 // pred_check
        %p312 = pneg %p190
      $region38: #{agcrn_cell_sequence.1} parent=11 // pred_check_branch
        %314 = sbr.rel (%p312) target = $region40
      $region39: #{agcrn_cell_sequence.1} parent=11 // pred_region
        _
      $region40: #{agcrn_cell_sequence.1} parent=11 // pred_fallthru
        _
      // Predicated region
      $region41: #{agcrn_cell_sequence.1} parent=11 // pred_check
        %p315 = pneg %p211
      $region42: #{agcrn_cell_sequence.1} parent=11 // pred_check_branch
        %317 = sbr.rel (%p315) target = $region44
      $region43: #{agcrn_cell_sequence.1} parent=11 // pred_region
        _
      $region44: #{agcrn_cell_sequence.1} parent=11 // pred_fallthru
        _
      // Predicated region
      $region45: #{agcrn_cell_sequence.1} parent=11 // pred_check
        %p318 = pneg %p232
      $region46: #{agcrn_cell_sequence.1} parent=11 // pred_check_branch
        %320 = sbr.rel (%p318) target = $region48
      $region47: #{agcrn_cell_sequence.1} parent=11 // pred_region
        _
      $region48: #{agcrn_cell_sequence.1} parent=11 // pred_fallthru
        _
      // Predicated region
      $region49: #{agcrn_cell_sequence.1} parent=11 // pred_check
        %p321 = pneg %p253
      $region50: #{agcrn_cell_sequence.1} parent=11 // pred_check_branch
        %323 = sbr.rel (%p321) target = $region52
      $region51: #{agcrn_cell_sequence.1} parent=11 // pred_region
        _
      $region52: #{agcrn_cell_sequence.1} parent=11 // pred_fallthru
        _
    $region12: #{agcrn_cell_sequence.1} parent=5 // pred_fallthru
      _
    %p324 = scmp.lt.s32.totalorder %s17, 8
    // Predicated region
    $region53: #{agcrn_cell_sequence.1} parent=5 // pred_check
      %p325 = pneg %p324
    $region54: #{agcrn_cell_sequence.1} parent=5 // pred_check_branch
      %327 = sbr.rel (%p325) target = $region56
    $region55: #{agcrn_cell_sequence.1} parent=5 // pred_region
      // Predicated region
      $region57: #{agcrn_cell_sequence.1} parent=55 // pred_check
        %p328 = pneg %p37
      $region58: #{agcrn_cell_sequence.1} parent=55 // pred_check_branch
        %330 = sbr.rel (%p328) target = $region60
      $region59: #{agcrn_cell_sequence.1} parent=55 // pred_region
        %p331 = scmp.lt.s32.totalorder %s17, 7
        %s332 = scalar_select %p331, %s17, 7
        %s333 = smul.addr %s332, 4
        %s334 = smul.addr %s333, 8
        %s335 = scalar_lea.vmem %s0, %s334
      $region60: #{agcrn_cell_sequence.1} parent=55 // pred_fallthru
        _
    $region56: #{agcrn_cell_sequence.1} parent=5 // pred_fallthru
      _
    %p336 = scmp.le.s32.totalorder 1, %s17
    %p337 = scmp.lt.s32.totalorder %s17, 9
    %p338 = pnand %p336, %p337
    %p339 = pneg %p338
    // Predicated region
    $region61: #{agcrn_cell_sequence.1} parent=5 // pred_check
      _
    $region62: #{agcrn_cell_sequence.1} parent=5 // pred_check_branch
      %341 = sbr.rel (%p338) target = $region64
    $region63: #{agcrn_cell_sequence.1} parent=5 // pred_region
      %s342 = ssub.s32 %s17, 1
      %p343 = scmp.lt.s32.totalorder %s22, 7
      %s344 = scalar_select %p343, %s22, 7
      %s345 = smul.addr %s344, 4
      %s346 = smul.addr %s345, 8
      %s347 = scalar_lea.vmem %s0, %s346
      %p348 = pneg %p43
      %p349 = pneg %p40
      %p350 = pneg %p64
      %p351 = pneg %p61
      %p352 = pneg %p85
      %p353 = pneg %p82
      %p354 = pneg %p106
      %p355 = pneg %p103
      %p356 = pneg %p127
      %p357 = pneg %p124
      %p358 = pneg %p148
      %p359 = pneg %p145
      %p360 = pneg %p169
      %p361 = pneg %p166
      %p362 = pneg %p190
      %p363 = pneg %p187
      %p364 = pneg %p211
      %p365 = pneg %p208
      %p366 = pneg %p232
      %p367 = pneg %p229
      %p368 = pneg %p253
      %p369 = pneg %p250
      %p370 = pneg %p279
      %p371 = pneg %p276
      %p372 = scmp.lt.s32.totalorder %s22, 7
      %s373 = scalar_select %p372, %s22, 7
      %s374 = smul.addr %s373, 4
      %s375 = smul.addr %s374, 8
      %s376 = scalar_lea.vmem %s11, %s375
      %p377 = scmp.lt.s32.totalorder %s22, 7
      %s378 = scalar_select %p377, %s22, 7
      %s379 = smul.addr %s378, 4
      %s380 = smul.addr %s379, 8
      %s381 = scalar_lea.vmem %s0, %s380
      %p382 = scmp.lt.s32.totalorder %s22, 7
      %s383 = scalar_select %p382, %s22, 7
      %s384 = smul.addr %s383, 4
      %s385 = smul.addr %s384, 8
      %s386 = scalar_lea.vmem %s11, %s385
      %p387 = scmp.eq.s32.totalorder %s22, 0
      // Predicated region
      $region65: #{agcrn_cell_sequence.1} parent=63 // pred_check
        %p388 = pneg %p387
      $region66: #{agcrn_cell_sequence.1} parent=63 // pred_check_branch
        %390 = sbr.rel (%p388) target = $region68
      $region67: #{agcrn_cell_sequence.1} parent=63 // pred_region
        %v391 = vld [vmem:[%s1] sm:$0xff]
        %v392 = vld [vmem:[%s1 + $0x8] sm:$0xff]
        %v393 = vld [vmem:[%s1 + $0x10] sm:$0xff]
        %v394 = vld [vmem:[%s1 + $0x18] sm:$0xff]
        %vm395 = vcmask 261120
        %396 = vst.msk [vmem:[#allocation2] sm:$0xff] %vm395, %v391
        %397 = vst.msk [vmem:[#allocation2 + $0x8] sm:$0xff] %vm395, %v392
        %398 = vst.msk [vmem:[#allocation2 + $0x10] sm:$0xff] %vm395, %v393
        %399 = vst.msk [vmem:[#allocation2 + $0x18] sm:$0xff] %vm395, %v394
      $region68: #{agcrn_cell_sequence.1} parent=63 // pred_fallthru
        _
      %v400 = vld [vmem:[%s381] sm:$0xff]
      %v401 = vld [vmem:[%s381 + $0x8] sm:$0xff]
      %v402 = vld [vmem:[%s381 + $0x10] sm:$0xff]
      %v403 = vld [vmem:[%s381 + $0x18] sm:$0xff]
      %v404 = vld [vmem:[#allocation2] sm:$0xff]
      %v405 = vld [vmem:[#allocation2 + $0x8] sm:$0xff]
      %v406 = vld [vmem:[#allocation2 + $0x10] sm:$0xff]
      %v407 = vld [vmem:[#allocation2 + $0x18] sm:$0xff]
      %v408 = vld [vmem:[%s2] sm:$0xff]
      %v409 = vld [vmem:[%s2 + $0x8] sm:$0xff]
      %vm410 = vcmask 130048
      %v412 = vsel %vm410, %v408, 0
      %v415 = vsel %vm410, %v409, 0
      %417 = vmatprep.subr.mxu0 0.0
      %418 = vmatpush1.msra.mxu0 0.0
      %419 = vmatprep.subr.mxu0 0.0
      %420 = vmatpush1.msra.mxu0 0.0
      %421 = vmatprep.subr.mxu0 0.0
      %422 = vmatpush1.msra.mxu0 0.0
      %423 = vmatprep.subr.mxu0 0.0
      %424 = vmatpush1.msra.mxu0 0.0
      %425 = vmatprep.subr.mxu0 0.0
      %426 = vmatpush1.msra.mxu0 0.0
      %427 = vmatprep.subr.mxu0 0.0
      %428 = vmatpush1.msra.mxu0 0.0
      %429 = vmatprep.subr.mxu0 0.0
      %430 = vmatpush1.msra.mxu0 0.0
      %431 = vmatprep.subr.mxu0 0.0
      %432 = vmatpush1.msra.mxu0 0.0
      %433 = vmatprep.subr.mxu0 0.0
      %434 = vmatpush1.msra.mxu0 0.0
      %435 = vmatprep.subr.mxu0 0.0
      %436 = vmatpush1.msra.mxu0 0.0
      %437 = vmatprep.subr.mxu0 0.0
      %438 = vmatpush1.msra.mxu0 0.0
      %439 = vmatprep.subr.mxu0 0.0
      %440 = vmatpush1.msra.mxu0 0.0
      %441 = vmatprep.subr.mxu0 0.0
      %442 = vmatpush1.msra.mxu0 0.0
      %443 = vmatprep.subr.mxu0 0.0
      %444 = vmatpush1.msra.mxu0 0.0
      %445 = vmatprep.subr.mxu0 0.0
      %446 = vmatpush1.msra.mxu0 %v401
      %447 = vmatprep.subr.mxu0 0.0
      %448 = vmatpush1.msra.mxu0 %v400
      %449 = vmatprep.subr.mxu0 0.0
      %450 = vmatpush2.msra.mxu0 0.0
      %451 = vmatprep.subr.mxu0 0.0
      %452 = vmatpush2.msra.mxu0 0.0
      %453 = vmatprep.subr.mxu0 0.0
      %454 = vmatpush2.msra.mxu0 0.0
      %455 = vmatprep.subr.mxu0 0.0
      %456 = vmatpush2.msra.mxu0 0.0
      %457 = vmatprep.subr.mxu0 0.0
      %458 = vmatpush2.msra.mxu0 0.0
      %459 = vmatprep.subr.mxu0 0.0
      %460 = vmatpush2.msra.mxu0 0.0
      %461 = vmatprep.subr.mxu0 0.0
      %462 = vmatpush2.msra.mxu0 0.0
      %463 = vmatprep.subr.mxu0 0.0
      %464 = vmatpush2.msra.mxu0 0.0
      %465 = vmatprep.subr.mxu0 0.0
      %466 = vmatpush2.msra.mxu0 0.0
      %467 = vmatprep.subr.mxu0 0.0
      %468 = vmatpush2.msra.mxu0 0.0
      %469 = vmatprep.subr.mxu0 0.0
      %470 = vmatpush2.msra.mxu0 0.0
      %471 = vmatprep.subr.mxu0 0.0
      %472 = vmatpush2.msra.mxu0 0.0
      %473 = vmatprep.subr.mxu0 0.0
      %474 = vmatpush2.msra.mxu0 0.0
      %475 = vmatprep.subr.mxu0 0.0
      %476 = vmatpush2.msra.mxu0 0.0
      %477 = vmatprep.subr.mxu0 0.0
      %478 = vmatpush2.msra.mxu0 0.0
      %479 = vmatprep.subr.mxu0 0.0
      %480 = vmatpush2.msra.mxu0 0.0
      %481 = vmatprep.mubr.f32.mxu0 0.0
      %482 = vmatmul.mubr.f32.gmra.mxu0 %v412
      %v483 = vpop.f32.mrf.mxu0
      %v484 = vadd.f32 0.0, %v483
      %v485 = vpop.f32.mrf.mxu0
      %486 = vmatprep.mubr.f32.mxu0 0.0
      %487 = vmatmul.mubr.f32.gmra.mxu0 %v415
      %v488 = vpop.f32.mrf.mxu0
      %v489 = vadd.f32 0.0, %v488
      %v490 = vpop.f32.mrf.mxu0
      %491 = vdwg.mxu0
      %492 = vmatprep.subr.mxu0 0.0
      %493 = vmatpush1.msra.mxu0 0.0
      %494 = vmatprep.subr.mxu0 0.0
      %495 = vmatpush1.msra.mxu0 0.0
      %496 = vmatprep.subr.mxu0 0.0
      %497 = vmatpush1.msra.mxu0 0.0
      %498 = vmatprep.subr.mxu0 0.0
      %499 = vmatpush1.msra.mxu0 0.0
      %500 = vmatprep.subr.mxu0 0.0
      %501 = vmatpush1.msra.mxu0 0.0
      %502 = vmatprep.subr.mxu0 0.0
      %503 = vmatpush1.msra.mxu0 0.0
      %504 = vmatprep.subr.mxu0 0.0
      %505 = vmatpush1.msra.mxu0 0.0
      %506 = vmatprep.subr.mxu0 0.0
      %507 = vmatpush1.msra.mxu0 0.0
      %508 = vmatprep.subr.mxu0 0.0
      %509 = vmatpush1.msra.mxu0 0.0
      %510 = vmatprep.subr.mxu0 0.0
      %511 = vmatpush1.msra.mxu0 0.0
      %512 = vmatprep.subr.mxu0 0.0
      %513 = vmatpush1.msra.mxu0 0.0
      %514 = vmatprep.subr.mxu0 0.0
      %515 = vmatpush1.msra.mxu0 0.0
      %516 = vmatprep.subr.mxu0 0.0
      %517 = vmatpush1.msra.mxu0 0.0
      %518 = vmatprep.subr.mxu0 0.0
      %519 = vmatpush1.msra.mxu0 0.0
      %520 = vmatprep.subr.mxu0 0.0
      %521 = vmatpush1.msra.mxu0 %v403
      %522 = vmatprep.subr.mxu0 0.0
      %523 = vmatpush1.msra.mxu0 %v402
      %524 = vmatprep.subr.mxu0 0.0
      %525 = vmatpush2.msra.mxu0 0.0
      %526 = vmatprep.subr.mxu0 0.0
      %527 = vmatpush2.msra.mxu0 0.0
      %528 = vmatprep.subr.mxu0 0.0
      %529 = vmatpush2.msra.mxu0 0.0
      %530 = vmatprep.subr.mxu0 0.0
      %531 = vmatpush2.msra.mxu0 0.0
      %532 = vmatprep.subr.mxu0 0.0
      %533 = vmatpush2.msra.mxu0 0.0
      %534 = vmatprep.subr.mxu0 0.0
      %535 = vmatpush2.msra.mxu0 0.0
      %536 = vmatprep.subr.mxu0 0.0
      %537 = vmatpush2.msra.mxu0 0.0
      %538 = vmatprep.subr.mxu0 0.0
      %539 = vmatpush2.msra.mxu0 0.0
      %540 = vmatprep.subr.mxu0 0.0
      %541 = vmatpush2.msra.mxu0 0.0
      %542 = vmatprep.subr.mxu0 0.0
      %543 = vmatpush2.msra.mxu0 0.0
      %544 = vmatprep.subr.mxu0 0.0
      %545 = vmatpush2.msra.mxu0 0.0
      %546 = vmatprep.subr.mxu0 0.0
      %547 = vmatpush2.msra.mxu0 0.0
      %548 = vmatprep.subr.mxu0 0.0
      %549 = vmatpush2.msra.mxu0 0.0
      %550 = vmatprep.subr.mxu0 0.0
      %551 = vmatpush2.msra.mxu0 0.0
      %552 = vmatprep.subr.mxu0 0.0
      %553 = vmatpush2.msra.mxu0 0.0
      %554 = vmatprep.subr.mxu0 0.0
      %555 = vmatpush2.msra.mxu0 0.0
      %556 = vmatprep.mubr.f32.mxu0 0.0
      %557 = vmatmul.mubr.f32.gmra.mxu0 %v412
      %v558 = vpop.f32.mrf.mxu0
      %v559 = vadd.f32 0.0, %v558
      %v560 = vpop.f32.mrf.mxu0
      %561 = vmatprep.mubr.f32.mxu0 0.0
      %562 = vmatmul.mubr.f32.gmra.mxu0 %v415
      %v563 = vpop.f32.mrf.mxu0
      %v564 = vadd.f32 0.0, %v563
      %v565 = vpop.f32.mrf.mxu0
      %566 = vdwg.mxu0
      %v567 = vld [vmem:[%s3] sm:$0xff]
      %v568 = vld [vmem:[%s3 + $0x8] sm:$0xff]
      %v569 = vld [vmem:[%s4] sm:$0xff]
      %v570 = vld [vmem:[%s4 + $0x8] sm:$0xff]
      %v571 = vld [vmem:[%s4 + $0x10] sm:$0xff]
      %v572 = vld [vmem:[%s4 + $0x18] sm:$0xff]
      %v573 = vld [vmem:[%s4 + $0x20] sm:$0xff]
      %v574 = vld [vmem:[%s4 + $0x28] sm:$0xff]
      %v575 = vld [vmem:[%s4 + $0x30] sm:$0xff]
      %v576 = vld [vmem:[%s4 + $0x38] sm:$0xff]
      %v577 = vld [vmem:[%s4 + $0x40] sm:$0xff]
      %v578 = vld [vmem:[%s4 + $0x48] sm:$0xff]
      %v579 = vld [vmem:[%s4 + $0x50] sm:$0xff]
      %v580 = vld [vmem:[%s4 + $0x58] sm:$0xff]
      %v581 = vld [vmem:[%s4 + $0x60] sm:$0xff]
      %v582 = vld [vmem:[%s4 + $0x68] sm:$0xff]
      %v583 = vld [vmem:[%s4 + $0x70] sm:$0xff]
      %v584 = vld [vmem:[%s4 + $0x78] sm:$0xff]
      %vm585 = vcmask 261120
      %v587 = vsel %vm585, %v404, 0
      %v590 = vsel %vm585, %v405, 0
      %v593 = vsel %vm585, %v406, 0
      %v596 = vsel %vm585, %v407, 0
      %598 = vmatprep.subr.mxu0 0.0
      %599 = vmatpush1.msra.mxu0 0.0
      %600 = vmatprep.subr.mxu0 0.0
      %601 = vmatpush1.msra.mxu0 0.0
      %602 = vmatprep.subr.mxu0 0.0
      %603 = vmatpush1.msra.mxu0 0.0
      %604 = vmatprep.subr.mxu0 0.0
      %605 = vmatpush1.msra.mxu0 0.0
      %606 = vmatprep.subr.mxu0 0.0
      %607 = vmatpush1.msra.mxu0 0.0
      %608 = vmatprep.subr.mxu0 0.0
      %609 = vmatpush1.msra.mxu0 0.0
      %610 = vmatprep.subr.mxu0 0.0
      %611 = vmatpush1.msra.mxu0 0.0
      %612 = vmatprep.subr.mxu0 0.0
      %613 = vmatpush1.msra.mxu0 0.0
      %614 = vmatprep.subr.mxu0 0.0
      %615 = vmatpush1.msra.mxu0 0.0
      %616 = vmatprep.subr.mxu0 0.0
      %617 = vmatpush1.msra.mxu0 0.0
      %618 = vmatprep.subr.mxu0 0.0
      %619 = vmatpush1.msra.mxu0 0.0
      %620 = vmatprep.subr.mxu0 0.0
      %621 = vmatpush1.msra.mxu0 0.0
      %622 = vmatprep.subr.mxu0 %v582
      %623 = vmatpush1.msra.mxu0 %v581
      %624 = vmatprep.subr.mxu0 %v578
      %625 = vmatpush1.msra.mxu0 %v577
      %626 = vmatprep.subr.mxu0 %v574
      %627 = vmatpush1.msra.mxu0 %v573
      %628 = vmatprep.subr.mxu0 %v570
      %629 = vmatpush1.msra.mxu0 %v569
      %630 = vmatprep.subr.mxu0 0.0
      %631 = vmatpush2.msra.mxu0 0.0
      %632 = vmatprep.subr.mxu0 0.0
      %633 = vmatpush2.msra.mxu0 0.0
      %634 = vmatprep.subr.mxu0 0.0
      %635 = vmatpush2.msra.mxu0 0.0
      %636 = vmatprep.subr.mxu0 0.0
      %637 = vmatpush2.msra.mxu0 0.0
      %638 = vmatprep.subr.mxu0 0.0
      %639 = vmatpush2.msra.mxu0 0.0
      %640 = vmatprep.subr.mxu0 0.0
      %641 = vmatpush2.msra.mxu0 0.0
      %642 = vmatprep.subr.mxu0 0.0
      %643 = vmatpush2.msra.mxu0 0.0
      %644 = vmatprep.subr.mxu0 0.0
      %645 = vmatpush2.msra.mxu0 0.0
      %646 = vmatprep.subr.mxu0 0.0
      %647 = vmatpush2.msra.mxu0 0.0
      %648 = vmatprep.subr.mxu0 0.0
      %649 = vmatpush2.msra.mxu0 0.0
      %650 = vmatprep.subr.mxu0 0.0
      %651 = vmatpush2.msra.mxu0 0.0
      %652 = vmatprep.subr.mxu0 0.0
      %653 = vmatpush2.msra.mxu0 0.0
      %654 = vmatprep.subr.mxu0 0.0
      %655 = vmatpush2.msra.mxu0 0.0
      %656 = vmatprep.subr.mxu0 0.0
      %657 = vmatpush2.msra.mxu0 0.0
      %658 = vmatprep.subr.mxu0 0.0
      %659 = vmatpush2.msra.mxu0 0.0
      %660 = vmatprep.subr.mxu0 0.0
      %661 = vmatpush2.msra.mxu0 0.0
      %662 = vmatprep.mubr.f32.mxu0 0.0
      %663 = vmatmul.mubr.f32.gmra.mxu0 %v587
      %v664 = vpop.f32.mrf.mxu0
      %v665 = vadd.f32 0.0, %v664
      %v666 = vpop.f32.mrf.mxu0
      %v667 = vadd.f32 0.0, %v666
      %668 = vmatprep.mubr.f32.mxu0 0.0
      %669 = vmatmul.mubr.f32.gmra.mxu0 %v590
      %v670 = vpop.f32.mrf.mxu0
      %v671 = vadd.f32 0.0, %v670
      %v672 = vpop.f32.mrf.mxu0
      %v673 = vadd.f32 0.0, %v672
      %674 = vmatprep.mubr.f32.mxu0 0.0
      %675 = vmatmul.mubr.f32.gmra.mxu0 %v593
      %v676 = vpop.f32.mrf.mxu0
      %v677 = vadd.f32 0.0, %v676
      %v678 = vpop.f32.mrf.mxu0
      %v679 = vadd.f32 0.0, %v678
      %680 = vmatprep.mubr.f32.mxu0 0.0
      %681 = vmatmul.mubr.f32.gmra.mxu0 %v596
      %v682 = vpop.f32.mrf.mxu0
      %v683 = vadd.f32 0.0, %v682
      %v684 = vpop.f32.mrf.mxu0
      %v685 = vadd.f32 0.0, %v684
      %686 = vdwg.mxu0
      %687 = vmatprep.subr.mxu0 0.0
      %688 = vmatpush1.msra.mxu0 0.0
      %689 = vmatprep.subr.mxu0 0.0
      %690 = vmatpush1.msra.mxu0 0.0
      %691 = vmatprep.subr.mxu0 0.0
      %692 = vmatpush1.msra.mxu0 0.0
      %693 = vmatprep.subr.mxu0 0.0
      %694 = vmatpush1.msra.mxu0 0.0
      %695 = vmatprep.subr.mxu0 0.0
      %696 = vmatpush1.msra.mxu0 0.0
      %697 = vmatprep.subr.mxu0 0.0
      %698 = vmatpush1.msra.mxu0 0.0
      %699 = vmatprep.subr.mxu0 0.0
      %700 = vmatpush1.msra.mxu0 0.0
      %701 = vmatprep.subr.mxu0 0.0
      %702 = vmatpush1.msra.mxu0 0.0
      %703 = vmatprep.subr.mxu0 0.0
      %704 = vmatpush1.msra.mxu0 0.0
      %705 = vmatprep.subr.mxu0 0.0
      %706 = vmatpush1.msra.mxu0 0.0
      %707 = vmatprep.subr.mxu0 0.0
      %708 = vmatpush1.msra.mxu0 0.0
      %709 = vmatprep.subr.mxu0 0.0
      %710 = vmatpush1.msra.mxu0 0.0
      %711 = vmatprep.subr.mxu0 %v584
      %712 = vmatpush1.msra.mxu0 %v583
      %713 = vmatprep.subr.mxu0 %v580
      %714 = vmatpush1.msra.mxu0 %v579
      %715 = vmatprep.subr.mxu0 %v576
      %716 = vmatpush1.msra.mxu0 %v575
      %717 = vmatprep.subr.mxu0 %v572
      %718 = vmatpush1.msra.mxu0 %v571
      %719 = vmatprep.subr.mxu0 0.0
      %720 = vmatpush2.msra.mxu0 0.0
      %721 = vmatprep.subr.mxu0 0.0
      %722 = vmatpush2.msra.mxu0 0.0
      %723 = vmatprep.subr.mxu0 0.0
      %724 = vmatpush2.msra.mxu0 0.0
      %725 = vmatprep.subr.mxu0 0.0
      %726 = vmatpush2.msra.mxu0 0.0
      %727 = vmatprep.subr.mxu0 0.0
      %728 = vmatpush2.msra.mxu0 0.0
      %729 = vmatprep.subr.mxu0 0.0
      %730 = vmatpush2.msra.mxu0 0.0
      %731 = vmatprep.subr.mxu0 0.0
      %732 = vmatpush2.msra.mxu0 0.0
      %733 = vmatprep.subr.mxu0 0.0
      %734 = vmatpush2.msra.mxu0 0.0
      %735 = vmatprep.subr.mxu0 0.0
      %736 = vmatpush2.msra.mxu0 0.0
      %737 = vmatprep.subr.mxu0 0.0
      %738 = vmatpush2.msra.mxu0 0.0
      %739 = vmatprep.subr.mxu0 0.0
      %740 = vmatpush2.msra.mxu0 0.0
      %741 = vmatprep.subr.mxu0 0.0
      %742 = vmatpush2.msra.mxu0 0.0
      %743 = vmatprep.subr.mxu0 0.0
      %744 = vmatpush2.msra.mxu0 0.0
      %745 = vmatprep.subr.mxu0 0.0
      %746 = vmatpush2.msra.mxu0 0.0
      %747 = vmatprep.subr.mxu0 0.0
      %748 = vmatpush2.msra.mxu0 0.0
      %749 = vmatprep.subr.mxu0 0.0
      %750 = vmatpush2.msra.mxu0 0.0
      %751 = vmatprep.mubr.f32.mxu0 0.0
      %752 = vmatmul.mubr.f32.gmra.mxu0 %v587
      %v753 = vpop.f32.mrf.mxu0
      %v754 = vadd.f32 0.0, %v753
      %v755 = vpop.f32.mrf.mxu0
      %v756 = vadd.f32 0.0, %v755
      %757 = vmatprep.mubr.f32.mxu0 0.0
      %758 = vmatmul.mubr.f32.gmra.mxu0 %v590
      %v759 = vpop.f32.mrf.mxu0
      %v760 = vadd.f32 0.0, %v759
      %v761 = vpop.f32.mrf.mxu0
      %v762 = vadd.f32 0.0, %v761
      %763 = vmatprep.mubr.f32.mxu0 0.0
      %764 = vmatmul.mubr.f32.gmra.mxu0 %v593
      %v765 = vpop.f32.mrf.mxu0
      %v766 = vadd.f32 0.0, %v765
      %v767 = vpop.f32.mrf.mxu0
      %v768 = vadd.f32 0.0, %v767
      %769 = vmatprep.mubr.f32.mxu0 0.0
      %770 = vmatmul.mubr.f32.gmra.mxu0 %v596
      %v771 = vpop.f32.mrf.mxu0
      %v772 = vadd.f32 0.0, %v771
      %v773 = vpop.f32.mrf.mxu0
      %v774 = vadd.f32 0.0, %v773
      %775 = vdwg.mxu0
      %v778 = vcombine.high %v567, %v567
      %v779 = vcombine.high %v568, %v568
      %vm780 = vcmask 31744
      %v782 = vsel %vm780, %v400, 0
      %v785 = vsel %vm780, %v401, 0
      %v788 = vsel %vm780, %v402, 0
      %v791 = vsel %vm780, %v403, 0
      %vm793 = vcmask 1043456
      %v794 = vsel %vm793, %v567, 0
      %v796 = vsel %vm793, %v778, 0
      %v798 = vsel %vm793, %v568, 0
      %v800 = vsel %vm793, %v779, 0
      %802 = vmatprep.subr.mxu0 0.0
      %803 = vmatpush1.msra.mxu0 0.0
      %804 = vmatprep.subr.mxu0 0.0
      %805 = vmatpush1.msra.mxu0 0.0
      %806 = vmatprep.subr.mxu0 0.0
      %807 = vmatpush1.msra.mxu0 0.0
      %808 = vmatprep.subr.mxu0 0.0
      %809 = vmatpush1.msra.mxu0 0.0
      %810 = vmatprep.subr.mxu0 0.0
      %811 = vmatpush1.msra.mxu0 0.0
      %812 = vmatprep.subr.mxu0 0.0
      %813 = vmatpush1.msra.mxu0 0.0
      %814 = vmatprep.subr.mxu0 0.0
      %815 = vmatpush1.msra.mxu0 0.0
      %816 = vmatprep.subr.mxu0 0.0
      %817 = vmatpush1.msra.mxu0 0.0
      %818 = vmatprep.subr.mxu0 0.0
      %819 = vmatpush1.msra.mxu0 0.0
      %820 = vmatprep.subr.mxu0 0.0
      %821 = vmatpush1.msra.mxu0 0.0
      %822 = vmatprep.subr.mxu0 0.0
      %823 = vmatpush1.msra.mxu0 0.0
      %824 = vmatprep.subr.mxu0 0.0
      %825 = vmatpush1.msra.mxu0 0.0
      %826 = vmatprep.subr.mxu0 0.0
      %827 = vmatpush1.msra.mxu0 0.0
      %828 = vmatprep.subr.mxu0 0.0
      %829 = vmatpush1.msra.mxu0 0.0
      %830 = vmatprep.subr.mxu0 0.0
      %831 = vmatpush1.msra.mxu0 0.0
      %832 = vmatprep.subr.mxu0 %v796
      %833 = vmatpush1.msra.mxu0 %v794
      %834 = vmatprep.subr.mxu0 0.0
      %835 = vmatpush2.msra.mxu0 0.0
      %836 = vmatprep.subr.mxu0 0.0
      %837 = vmatpush2.msra.mxu0 0.0
      %838 = vmatprep.subr.mxu0 0.0
      %839 = vmatpush2.msra.mxu0 0.0
      %840 = vmatprep.subr.mxu0 0.0
      %841 = vmatpush2.msra.mxu0 0.0
      %842 = vmatprep.subr.mxu0 0.0
      %843 = vmatpush2.msra.mxu0 0.0
      %844 = vmatprep.subr.mxu0 0.0
      %845 = vmatpush2.msra.mxu0 0.0
      %846 = vmatprep.subr.mxu0 0.0
      %847 = vmatpush2.msra.mxu0 0.0
      %848 = vmatprep.subr.mxu0 0.0
      %849 = vmatpush2.msra.mxu0 0.0
      %850 = vmatprep.subr.mxu0 0.0
      %851 = vmatpush2.msra.mxu0 0.0
      %852 = vmatprep.subr.mxu0 0.0
      %853 = vmatpush2.msra.mxu0 0.0
      %854 = vmatprep.subr.mxu0 0.0
      %855 = vmatpush2.msra.mxu0 0.0
      %856 = vmatprep.subr.mxu0 0.0
      %857 = vmatpush2.msra.mxu0 0.0
      %858 = vmatprep.subr.mxu0 0.0
      %859 = vmatpush2.msra.mxu0 0.0
      %860 = vmatprep.subr.mxu0 0.0
      %861 = vmatpush2.msra.mxu0 0.0
      %862 = vmatprep.subr.mxu0 0.0
      %863 = vmatpush2.msra.mxu0 0.0
      %864 = vmatprep.subr.mxu0 0.0
      %865 = vmatpush2.msra.mxu0 0.0
      %866 = vmatprep.mubr.f32.mxu0 0.0
      %867 = vmatmul.mubr.f32.gmra.mxu0 %v782
      %v868 = vpop.f32.mrf.mxu0
      %v869 = vadd.f32 %v665, %v868
      %v870 = vpop.f32.mrf.mxu0
      %v871 = vadd.f32 %v667, %v870
      %872 = vmatprep.mubr.f32.mxu0 0.0
      %873 = vmatmul.mubr.f32.gmra.mxu0 %v785
      %v874 = vpop.f32.mrf.mxu0
      %v875 = vadd.f32 %v671, %v874
      %v876 = vpop.f32.mrf.mxu0
      %v877 = vadd.f32 %v673, %v876
      %878 = vmatprep.mubr.f32.mxu0 0.0
      %879 = vmatmul.mubr.f32.gmra.mxu0 %v788
      %v880 = vpop.f32.mrf.mxu0
      %v881 = vadd.f32 %v677, %v880
      %v882 = vpop.f32.mrf.mxu0
      %v883 = vadd.f32 %v679, %v882
      %884 = vmatprep.mubr.f32.mxu0 0.0
      %885 = vmatmul.mubr.f32.gmra.mxu0 %v791
      %v886 = vpop.f32.mrf.mxu0
      %v887 = vadd.f32 %v683, %v886
      %v888 = vpop.f32.mrf.mxu0
      %v889 = vadd.f32 %v685, %v888
      %890 = vdwg.mxu0
      %891 = vmatprep.subr.mxu0 0.0
      %892 = vmatpush1.msra.mxu0 0.0
      %893 = vmatprep.subr.mxu0 0.0
      %894 = vmatpush1.msra.mxu0 0.0
      %895 = vmatprep.subr.mxu0 0.0
      %896 = vmatpush1.msra.mxu0 0.0
      %897 = vmatprep.subr.mxu0 0.0
      %898 = vmatpush1.msra.mxu0 0.0
      %899 = vmatprep.subr.mxu0 0.0
      %900 = vmatpush1.msra.mxu0 0.0
      %901 = vmatprep.subr.mxu0 0.0
      %902 = vmatpush1.msra.mxu0 0.0
      %903 = vmatprep.subr.mxu0 0.0
      %904 = vmatpush1.msra.mxu0 0.0
      %905 = vmatprep.subr.mxu0 0.0
      %906 = vmatpush1.msra.mxu0 0.0
      %907 = vmatprep.subr.mxu0 0.0
      %908 = vmatpush1.msra.mxu0 0.0
      %909 = vmatprep.subr.mxu0 0.0
      %910 = vmatpush1.msra.mxu0 0.0
      %911 = vmatprep.subr.mxu0 0.0
      %912 = vmatpush1.msra.mxu0 0.0
      %913 = vmatprep.subr.mxu0 0.0
      %914 = vmatpush1.msra.mxu0 0.0
      %915 = vmatprep.subr.mxu0 0.0
      %916 = vmatpush1.msra.mxu0 0.0
      %917 = vmatprep.subr.mxu0 0.0
      %918 = vmatpush1.msra.mxu0 0.0
      %919 = vmatprep.subr.mxu0 0.0
      %920 = vmatpush1.msra.mxu0 0.0
      %921 = vmatprep.subr.mxu0 %v800
      %922 = vmatpush1.msra.mxu0 %v798
      %923 = vmatprep.subr.mxu0 0.0
      %924 = vmatpush2.msra.mxu0 0.0
      %925 = vmatprep.subr.mxu0 0.0
      %926 = vmatpush2.msra.mxu0 0.0
      %927 = vmatprep.subr.mxu0 0.0
      %928 = vmatpush2.msra.mxu0 0.0
      %929 = vmatprep.subr.mxu0 0.0
      %930 = vmatpush2.msra.mxu0 0.0
      %931 = vmatprep.subr.mxu0 0.0
      %932 = vmatpush2.msra.mxu0 0.0
      %933 = vmatprep.subr.mxu0 0.0
      %934 = vmatpush2.msra.mxu0 0.0
      %935 = vmatprep.subr.mxu0 0.0
      %936 = vmatpush2.msra.mxu0 0.0
      %937 = vmatprep.subr.mxu0 0.0
      %938 = vmatpush2.msra.mxu0 0.0
      %939 = vmatprep.subr.mxu0 0.0
      %940 = vmatpush2.msra.mxu0 0.0
      %941 = vmatprep.subr.mxu0 0.0
      %942 = vmatpush2.msra.mxu0 0.0
      %943 = vmatprep.subr.mxu0 0.0
      %944 = vmatpush2.msra.mxu0 0.0
      %945 = vmatprep.subr.mxu0 0.0
      %946 = vmatpush2.msra.mxu0 0.0
      %947 = vmatprep.subr.mxu0 0.0
      %948 = vmatpush2.msra.mxu0 0.0
      %949 = vmatprep.subr.mxu0 0.0
      %950 = vmatpush2.msra.mxu0 0.0
      %951 = vmatprep.subr.mxu0 0.0
      %952 = vmatpush2.msra.mxu0 0.0
      %953 = vmatprep.subr.mxu0 0.0
      %954 = vmatpush2.msra.mxu0 0.0
      %955 = vmatprep.mubr.f32.mxu0 0.0
      %956 = vmatmul.mubr.f32.gmra.mxu0 %v782
      %v957 = vpop.f32.mrf.mxu0
      %v958 = vadd.f32 %v754, %v957
      %v959 = vpop.f32.mrf.mxu0
      %v960 = vadd.f32 %v756, %v959
      %961 = vmatprep.mubr.f32.mxu0 0.0
      %962 = vmatmul.mubr.f32.gmra.mxu0 %v785
      %v963 = vpop.f32.mrf.mxu0
      %v964 = vadd.f32 %v760, %v963
      %v965 = vpop.f32.mrf.mxu0
      %v966 = vadd.f32 %v762, %v965
      %967 = vmatprep.mubr.f32.mxu0 0.0
      %968 = vmatmul.mubr.f32.gmra.mxu0 %v788
      %v969 = vpop.f32.mrf.mxu0
      %v970 = vadd.f32 %v766, %v969
      %v971 = vpop.f32.mrf.mxu0
      %v972 = vadd.f32 %v768, %v971
      %973 = vmatprep.mubr.f32.mxu0 0.0
      %974 = vmatmul.mubr.f32.gmra.mxu0 %v791
      %v975 = vpop.f32.mrf.mxu0
      %v976 = vadd.f32 %v772, %v975
      %v977 = vpop.f32.mrf.mxu0
      %v978 = vadd.f32 %v774, %v977
      %979 = vdwg.mxu0
      %980 = vmatprep.subr.mxu0 0.0
      %981 = vmatpush1.msra.mxu0 0.0
      %982 = vmatprep.subr.mxu0 0.0
      %983 = vmatpush1.msra.mxu0 0.0
      %984 = vmatprep.subr.mxu0 0.0
      %985 = vmatpush1.msra.mxu0 0.0
      %986 = vmatprep.subr.mxu0 0.0
      %987 = vmatpush1.msra.mxu0 0.0
      %988 = vmatprep.subr.mxu0 0.0
      %989 = vmatpush1.msra.mxu0 0.0
      %990 = vmatprep.subr.mxu0 0.0
      %991 = vmatpush1.msra.mxu0 0.0
      %992 = vmatprep.subr.mxu0 0.0
      %993 = vmatpush1.msra.mxu0 0.0
      %994 = vmatprep.subr.mxu0 0.0
      %995 = vmatpush1.msra.mxu0 0.0
      %996 = vmatprep.subr.mxu0 0.0
      %997 = vmatpush1.msra.mxu0 0.0
      %998 = vmatprep.subr.mxu0 0.0
      %999 = vmatpush1.msra.mxu0 0.0
      %1000 = vmatprep.subr.mxu0 0.0
      %1001 = vmatpush1.msra.mxu0 0.0
      %1002 = vmatprep.subr.mxu0 0.0
      %1003 = vmatpush1.msra.mxu0 0.0
      %1004 = vmatprep.subr.mxu0 0.0
      %1005 = vmatpush1.msra.mxu0 0.0
      %1006 = vmatprep.subr.mxu0 0.0
      %1007 = vmatpush1.msra.mxu0 0.0
      %1008 = vmatprep.subr.mxu0 0.0
      %1009 = vmatpush1.msra.mxu0 %v405
      %1010 = vmatprep.subr.mxu0 0.0
      %1011 = vmatpush1.msra.mxu0 %v404
      %1012 = vmatprep.subr.mxu0 0.0
      %1013 = vmatpush2.msra.mxu0 0.0
      %1014 = vmatprep.subr.mxu0 0.0
      %1015 = vmatpush2.msra.mxu0 0.0
      %1016 = vmatprep.subr.mxu0 0.0
      %1017 = vmatpush2.msra.mxu0 0.0
      %1018 = vmatprep.subr.mxu0 0.0
      %1019 = vmatpush2.msra.mxu0 0.0
      %1020 = vmatprep.subr.mxu0 0.0
      %1021 = vmatpush2.msra.mxu0 0.0
      %1022 = vmatprep.subr.mxu0 0.0
      %1023 = vmatpush2.msra.mxu0 0.0
      %1024 = vmatprep.subr.mxu0 0.0
      %1025 = vmatpush2.msra.mxu0 0.0
      %1026 = vmatprep.subr.mxu0 0.0
      %1027 = vmatpush2.msra.mxu0 0.0
      %1028 = vmatprep.subr.mxu0 0.0
      %1029 = vmatpush2.msra.mxu0 0.0
      %1030 = vmatprep.subr.mxu0 0.0
      %1031 = vmatpush2.msra.mxu0 0.0
      %1032 = vmatprep.subr.mxu0 0.0
      %1033 = vmatpush2.msra.mxu0 0.0
      %1034 = vmatprep.subr.mxu0 0.0
      %1035 = vmatpush2.msra.mxu0 0.0
      %1036 = vmatprep.subr.mxu0 0.0
      %1037 = vmatpush2.msra.mxu0 0.0
      %1038 = vmatprep.subr.mxu0 0.0
      %1039 = vmatpush2.msra.mxu0 0.0
      %1040 = vmatprep.subr.mxu0 0.0
      %1041 = vmatpush2.msra.mxu0 0.0
      %1042 = vmatprep.subr.mxu0 0.0
      %1043 = vmatpush2.msra.mxu0 0.0
      %1044 = vmatprep.mubr.f32.mxu0 0.0
      %1045 = vmatmul.mubr.f32.gmra.mxu0 %v412
      %v1046 = vpop.f32.mrf.mxu0
      %v1047 = vadd.f32 0.0, %v1046
      %v1048 = vpop.f32.mrf.mxu0
      %1049 = vmatprep.mubr.f32.mxu0 0.0
      %1050 = vmatmul.mubr.f32.gmra.mxu0 %v415
      %v1051 = vpop.f32.mrf.mxu0
      %v1052 = vadd.f32 0.0, %v1051
      %v1053 = vpop.f32.mrf.mxu0
      %1054 = vdwg.mxu0
      %1055 = vmatprep.subr.mxu0 0.0
      %1056 = vmatpush1.msra.mxu0 0.0
      %1057 = vmatprep.subr.mxu0 0.0
      %1058 = vmatpush1.msra.mxu0 0.0
      %1059 = vmatprep.subr.mxu0 0.0
      %1060 = vmatpush1.msra.mxu0 0.0
      %1061 = vmatprep.subr.mxu0 0.0
      %1062 = vmatpush1.msra.mxu0 0.0
      %1063 = vmatprep.subr.mxu0 0.0
      %1064 = vmatpush1.msra.mxu0 0.0
      %1065 = vmatprep.subr.mxu0 0.0
      %1066 = vmatpush1.msra.mxu0 0.0
      %1067 = vmatprep.subr.mxu0 0.0
      %1068 = vmatpush1.msra.mxu0 0.0
      %1069 = vmatprep.subr.mxu0 0.0
      %1070 = vmatpush1.msra.mxu0 0.0
      %1071 = vmatprep.subr.mxu0 0.0
      %1072 = vmatpush1.msra.mxu0 0.0
      %1073 = vmatprep.subr.mxu0 0.0
      %1074 = vmatpush1.msra.mxu0 0.0
      %1075 = vmatprep.subr.mxu0 0.0
      %1076 = vmatpush1.msra.mxu0 0.0
      %1077 = vmatprep.subr.mxu0 0.0
      %1078 = vmatpush1.msra.mxu0 0.0
      %1079 = vmatprep.subr.mxu0 0.0
      %1080 = vmatpush1.msra.mxu0 0.0
      %1081 = vmatprep.subr.mxu0 0.0
      %1082 = vmatpush1.msra.mxu0 0.0
      %1083 = vmatprep.subr.mxu0 0.0
      %1084 = vmatpush1.msra.mxu0 %v407
      %1085 = vmatprep.subr.mxu0 0.0
      %1086 = vmatpush1.msra.mxu0 %v406
      %1087 = vmatprep.subr.mxu0 0.0
      %1088 = vmatpush2.msra.mxu0 0.0
      %1089 = vmatprep.subr.mxu0 0.0
      %1090 = vmatpush2.msra.mxu0 0.0
      %1091 = vmatprep.subr.mxu0 0.0
      %1092 = vmatpush2.msra.mxu0 0.0
      %1093 = vmatprep.subr.mxu0 0.0
      %1094 = vmatpush2.msra.mxu0 0.0
      %1095 = vmatprep.subr.mxu0 0.0
      %1096 = vmatpush2.msra.mxu0 0.0
      %1097 = vmatprep.subr.mxu0 0.0
      %1098 = vmatpush2.msra.mxu0 0.0
      %1099 = vmatprep.subr.mxu0 0.0
      %1100 = vmatpush2.msra.mxu0 0.0
      %1101 = vmatprep.subr.mxu0 0.0
      %1102 = vmatpush2.msra.mxu0 0.0
      %1103 = vmatprep.subr.mxu0 0.0
      %1104 = vmatpush2.msra.mxu0 0.0
      %1105 = vmatprep.subr.mxu0 0.0
      %1106 = vmatpush2.msra.mxu0 0.0
      %1107 = vmatprep.subr.mxu0 0.0
      %1108 = vmatpush2.msra.mxu0 0.0
      %1109 = vmatprep.subr.mxu0 0.0
      %1110 = vmatpush2.msra.mxu0 0.0
      %1111 = vmatprep.subr.mxu0 0.0
      %1112 = vmatpush2.msra.mxu0 0.0
      %1113 = vmatprep.subr.mxu0 0.0
      %1114 = vmatpush2.msra.mxu0 0.0
      %1115 = vmatprep.subr.mxu0 0.0
      %1116 = vmatpush2.msra.mxu0 0.0
      %1117 = vmatprep.subr.mxu0 0.0
      %1118 = vmatpush2.msra.mxu0 0.0
      %1119 = vmatprep.mubr.f32.mxu0 0.0
      %1120 = vmatmul.mubr.f32.gmra.mxu0 %v412
      %v1121 = vpop.f32.mrf.mxu0
      %v1122 = vadd.f32 0.0, %v1121
      %v1123 = vpop.f32.mrf.mxu0
      %1124 = vmatprep.mubr.f32.mxu0 0.0
      %1125 = vmatmul.mubr.f32.gmra.mxu0 %v415
      %v1126 = vpop.f32.mrf.mxu0
      %v1127 = vadd.f32 0.0, %v1126
      %v1128 = vpop.f32.mrf.mxu0
      %1129 = vdwg.mxu0
      %s1130 = scalar_lea.vmem %s3, 16
      %v1131 = vld [vmem:[%s1130] sm:$0xff]
      %v1132 = vld [vmem:[%s1130 + $0x8] sm:$0xff]
      %s1133 = scalar_lea.vmem %s4, 128
      %v1134 = vld [vmem:[%s1133] sm:$0xff]
      %v1135 = vld [vmem:[%s1133 + $0x8] sm:$0xff]
      %v1136 = vld [vmem:[%s1133 + $0x10] sm:$0xff]
      %v1137 = vld [vmem:[%s1133 + $0x18] sm:$0xff]
      %v1138 = vld [vmem:[%s1133 + $0x20] sm:$0xff]
      %v1139 = vld [vmem:[%s1133 + $0x28] sm:$0xff]
      %v1140 = vld [vmem:[%s1133 + $0x30] sm:$0xff]
      %v1141 = vld [vmem:[%s1133 + $0x38] sm:$0xff]
      %v1142 = vld [vmem:[%s1133 + $0x40] sm:$0xff]
      %v1143 = vld [vmem:[%s1133 + $0x48] sm:$0xff]
      %v1144 = vld [vmem:[%s1133 + $0x50] sm:$0xff]
      %v1145 = vld [vmem:[%s1133 + $0x58] sm:$0xff]
      %v1146 = vld [vmem:[%s1133 + $0x60] sm:$0xff]
      %v1147 = vld [vmem:[%s1133 + $0x68] sm:$0xff]
      %v1148 = vld [vmem:[%s1133 + $0x70] sm:$0xff]
      %v1149 = vld [vmem:[%s1133 + $0x78] sm:$0xff]
      %v1151 = vsel %vm585, %v1047, 0
      %v1154 = vsel %vm585, %v1052, 0
      %v1157 = vsel %vm585, %v1122, 0
      %v1160 = vsel %vm585, %v1127, 0
      %1162 = vmatprep.subr.mxu0 0.0
      %1163 = vmatpush1.msra.mxu0 0.0
      %1164 = vmatprep.subr.mxu0 0.0
      %1165 = vmatpush1.msra.mxu0 0.0
      %1166 = vmatprep.subr.mxu0 0.0
      %1167 = vmatpush1.msra.mxu0 0.0
      %1168 = vmatprep.subr.mxu0 0.0
      %1169 = vmatpush1.msra.mxu0 0.0
      %1170 = vmatprep.subr.mxu0 0.0
      %1171 = vmatpush1.msra.mxu0 0.0
      %1172 = vmatprep.subr.mxu0 0.0
      %1173 = vmatpush1.msra.mxu0 0.0
      %1174 = vmatprep.subr.mxu0 0.0
      %1175 = vmatpush1.msra.mxu0 0.0
      %1176 = vmatprep.subr.mxu0 0.0
      %1177 = vmatpush1.msra.mxu0 0.0
      %1178 = vmatprep.subr.mxu0 0.0
      %1179 = vmatpush1.msra.mxu0 0.0
      %1180 = vmatprep.subr.mxu0 0.0
      %1181 = vmatpush1.msra.mxu0 0.0
      %1182 = vmatprep.subr.mxu0 0.0
      %1183 = vmatpush1.msra.mxu0 0.0
      %1184 = vmatprep.subr.mxu0 0.0
      %1185 = vmatpush1.msra.mxu0 0.0
      %1186 = vmatprep.subr.mxu0 %v1147
      %1187 = vmatpush1.msra.mxu0 %v1146
      %1188 = vmatprep.subr.mxu0 %v1143
      %1189 = vmatpush1.msra.mxu0 %v1142
      %1190 = vmatprep.subr.mxu0 %v1139
      %1191 = vmatpush1.msra.mxu0 %v1138
      %1192 = vmatprep.subr.mxu0 %v1135
      %1193 = vmatpush1.msra.mxu0 %v1134
      %1194 = vmatprep.subr.mxu0 0.0
      %1195 = vmatpush2.msra.mxu0 0.0
      %1196 = vmatprep.subr.mxu0 0.0
      %1197 = vmatpush2.msra.mxu0 0.0
      %1198 = vmatprep.subr.mxu0 0.0
      %1199 = vmatpush2.msra.mxu0 0.0
      %1200 = vmatprep.subr.mxu0 0.0
      %1201 = vmatpush2.msra.mxu0 0.0
      %1202 = vmatprep.subr.mxu0 0.0
      %1203 = vmatpush2.msra.mxu0 0.0
      %1204 = vmatprep.subr.mxu0 0.0
      %1205 = vmatpush2.msra.mxu0 0.0
      %1206 = vmatprep.subr.mxu0 0.0
      %1207 = vmatpush2.msra.mxu0 0.0
      %1208 = vmatprep.subr.mxu0 0.0
      %1209 = vmatpush2.msra.mxu0 0.0
      %1210 = vmatprep.subr.mxu0 0.0
      %1211 = vmatpush2.msra.mxu0 0.0
      %1212 = vmatprep.subr.mxu0 0.0
      %1213 = vmatpush2.msra.mxu0 0.0
      %1214 = vmatprep.subr.mxu0 0.0
      %1215 = vmatpush2.msra.mxu0 0.0
      %1216 = vmatprep.subr.mxu0 0.0
      %1217 = vmatpush2.msra.mxu0 0.0
      %1218 = vmatprep.subr.mxu0 0.0
      %1219 = vmatpush2.msra.mxu0 0.0
      %1220 = vmatprep.subr.mxu0 0.0
      %1221 = vmatpush2.msra.mxu0 0.0
      %1222 = vmatprep.subr.mxu0 0.0
      %1223 = vmatpush2.msra.mxu0 0.0
      %1224 = vmatprep.subr.mxu0 0.0
      %1225 = vmatpush2.msra.mxu0 0.0
      %1226 = vmatprep.mubr.f32.mxu0 0.0
      %1227 = vmatmul.mubr.f32.gmra.mxu0 %v1151
      %v1228 = vpop.f32.mrf.mxu0
      %v1229 = vadd.f32 0.0, %v1228
      %v1230 = vpop.f32.mrf.mxu0
      %v1231 = vadd.f32 0.0, %v1230
      %1232 = vmatprep.mubr.f32.mxu0 0.0
      %1233 = vmatmul.mubr.f32.gmra.mxu0 %v1154
      %v1234 = vpop.f32.mrf.mxu0
      %v1235 = vadd.f32 0.0, %v1234
      %v1236 = vpop.f32.mrf.mxu0
      %v1237 = vadd.f32 0.0, %v1236
      %1238 = vmatprep.mubr.f32.mxu0 0.0
      %1239 = vmatmul.mubr.f32.gmra.mxu0 %v1157
      %v1240 = vpop.f32.mrf.mxu0
      %v1241 = vadd.f32 0.0, %v1240
      %v1242 = vpop.f32.mrf.mxu0
      %v1243 = vadd.f32 0.0, %v1242
      %1244 = vmatprep.mubr.f32.mxu0 0.0
      %1245 = vmatmul.mubr.f32.gmra.mxu0 %v1160
      %v1246 = vpop.f32.mrf.mxu0
      %v1247 = vadd.f32 0.0, %v1246
      %v1248 = vpop.f32.mrf.mxu0
      %v1249 = vadd.f32 0.0, %v1248
      %1250 = vdwg.mxu0
      %1251 = vmatprep.subr.mxu0 0.0
      %1252 = vmatpush1.msra.mxu0 0.0
      %1253 = vmatprep.subr.mxu0 0.0
      %1254 = vmatpush1.msra.mxu0 0.0
      %1255 = vmatprep.subr.mxu0 0.0
      %1256 = vmatpush1.msra.mxu0 0.0
      %1257 = vmatprep.subr.mxu0 0.0
      %1258 = vmatpush1.msra.mxu0 0.0
      %1259 = vmatprep.subr.mxu0 0.0
      %1260 = vmatpush1.msra.mxu0 0.0
      %1261 = vmatprep.subr.mxu0 0.0
      %1262 = vmatpush1.msra.mxu0 0.0
      %1263 = vmatprep.subr.mxu0 0.0
      %1264 = vmatpush1.msra.mxu0 0.0
      %1265 = vmatprep.subr.mxu0 0.0
      %1266 = vmatpush1.msra.mxu0 0.0
      %1267 = vmatprep.subr.mxu0 0.0
      %1268 = vmatpush1.msra.mxu0 0.0
      %1269 = vmatprep.subr.mxu0 0.0
      %1270 = vmatpush1.msra.mxu0 0.0
      %1271 = vmatprep.subr.mxu0 0.0
      %1272 = vmatpush1.msra.mxu0 0.0
      %1273 = vmatprep.subr.mxu0 0.0
      %1274 = vmatpush1.msra.mxu0 0.0
      %1275 = vmatprep.subr.mxu0 %v1149
      %1276 = vmatpush1.msra.mxu0 %v1148
      %1277 = vmatprep.subr.mxu0 %v1145
      %1278 = vmatpush1.msra.mxu0 %v1144
      %1279 = vmatprep.subr.mxu0 %v1141
      %1280 = vmatpush1.msra.mxu0 %v1140
      %1281 = vmatprep.subr.mxu0 %v1137
      %1282 = vmatpush1.msra.mxu0 %v1136
      %1283 = vmatprep.subr.mxu0 0.0
      %1284 = vmatpush2.msra.mxu0 0.0
      %1285 = vmatprep.subr.mxu0 0.0
      %1286 = vmatpush2.msra.mxu0 0.0
      %1287 = vmatprep.subr.mxu0 0.0
      %1288 = vmatpush2.msra.mxu0 0.0
      %1289 = vmatprep.subr.mxu0 0.0
      %1290 = vmatpush2.msra.mxu0 0.0
      %1291 = vmatprep.subr.mxu0 0.0
      %1292 = vmatpush2.msra.mxu0 0.0
      %1293 = vmatprep.subr.mxu0 0.0
      %1294 = vmatpush2.msra.mxu0 0.0
      %1295 = vmatprep.subr.mxu0 0.0
      %1296 = vmatpush2.msra.mxu0 0.0
      %1297 = vmatprep.subr.mxu0 0.0
      %1298 = vmatpush2.msra.mxu0 0.0
      %1299 = vmatprep.subr.mxu0 0.0
      %1300 = vmatpush2.msra.mxu0 0.0
      %1301 = vmatprep.subr.mxu0 0.0
      %1302 = vmatpush2.msra.mxu0 0.0
      %1303 = vmatprep.subr.mxu0 0.0
      %1304 = vmatpush2.msra.mxu0 0.0
      %1305 = vmatprep.subr.mxu0 0.0
      %1306 = vmatpush2.msra.mxu0 0.0
      %1307 = vmatprep.subr.mxu0 0.0
      %1308 = vmatpush2.msra.mxu0 0.0
      %1309 = vmatprep.subr.mxu0 0.0
      %1310 = vmatpush2.msra.mxu0 0.0
      %1311 = vmatprep.subr.mxu0 0.0
      %1312 = vmatpush2.msra.mxu0 0.0
      %1313 = vmatprep.subr.mxu0 0.0
      %1314 = vmatpush2.msra.mxu0 0.0
      %1315 = vmatprep.mubr.f32.mxu0 0.0
      %1316 = vmatmul.mubr.f32.gmra.mxu0 %v1151
      %v1317 = vpop.f32.mrf.mxu0
      %v1318 = vadd.f32 0.0, %v1317
      %v1319 = vpop.f32.mrf.mxu0
      %v1320 = vadd.f32 0.0, %v1319
      %1321 = vmatprep.mubr.f32.mxu0 0.0
      %1322 = vmatmul.mubr.f32.gmra.mxu0 %v1154
      %v1323 = vpop.f32.mrf.mxu0
      %v1324 = vadd.f32 0.0, %v1323
      %v1325 = vpop.f32.mrf.mxu0
      %v1326 = vadd.f32 0.0, %v1325
      %1327 = vmatprep.mubr.f32.mxu0 0.0
      %1328 = vmatmul.mubr.f32.gmra.mxu0 %v1157
      %v1329 = vpop.f32.mrf.mxu0
      %v1330 = vadd.f32 0.0, %v1329
      %v1331 = vpop.f32.mrf.mxu0
      %v1332 = vadd.f32 0.0, %v1331
      %1333 = vmatprep.mubr.f32.mxu0 0.0
      %1334 = vmatmul.mubr.f32.gmra.mxu0 %v1160
      %v1335 = vpop.f32.mrf.mxu0
      %v1336 = vadd.f32 0.0, %v1335
      %v1337 = vpop.f32.mrf.mxu0
      %v1338 = vadd.f32 0.0, %v1337
      %1339 = vdwg.mxu0
      %v1342 = vcombine.high %v1131, %v1131
      %v1343 = vcombine.high %v1132, %v1132
      %v1345 = vsel %vm780, %v484, 0
      %v1348 = vsel %vm780, %v489, 0
      %v1351 = vsel %vm780, %v559, 0
      %v1354 = vsel %vm780, %v564, 0
      %v1356 = vsel %vm793, %v1131, 0
      %v1358 = vsel %vm793, %v1342, 0
      %v1360 = vsel %vm793, %v1132, 0
      %v1362 = vsel %vm793, %v1343, 0
      %1364 = vmatprep.subr.mxu0 0.0
      %1365 = vmatpush1.msra.mxu0 0.0
      %1366 = vmatprep.subr.mxu0 0.0
      %1367 = vmatpush1.msra.mxu0 0.0
      %1368 = vmatprep.subr.mxu0 0.0
      %1369 = vmatpush1.msra.mxu0 0.0
      %1370 = vmatprep.subr.mxu0 0.0
      %1371 = vmatpush1.msra.mxu0 0.0
      %1372 = vmatprep.subr.mxu0 0.0
      %1373 = vmatpush1.msra.mxu0 0.0
      %1374 = vmatprep.subr.mxu0 0.0
      %1375 = vmatpush1.msra.mxu0 0.0
      %1376 = vmatprep.subr.mxu0 0.0
      %1377 = vmatpush1.msra.mxu0 0.0
      %1378 = vmatprep.subr.mxu0 0.0
      %1379 = vmatpush1.msra.mxu0 0.0
      %1380 = vmatprep.subr.mxu0 0.0
      %1381 = vmatpush1.msra.mxu0 0.0
      %1382 = vmatprep.subr.mxu0 0.0
      %1383 = vmatpush1.msra.mxu0 0.0
      %1384 = vmatprep.subr.mxu0 0.0
      %1385 = vmatpush1.msra.mxu0 0.0
      %1386 = vmatprep.subr.mxu0 0.0
      %1387 = vmatpush1.msra.mxu0 0.0
      %1388 = vmatprep.subr.mxu0 0.0
      %1389 = vmatpush1.msra.mxu0 0.0
      %1390 = vmatprep.subr.mxu0 0.0
      %1391 = vmatpush1.msra.mxu0 0.0
      %1392 = vmatprep.subr.mxu0 0.0
      %1393 = vmatpush1.msra.mxu0 0.0
      %1394 = vmatprep.subr.mxu0 %v1358
      %1395 = vmatpush1.msra.mxu0 %v1356
      %1396 = vmatprep.subr.mxu0 0.0
      %1397 = vmatpush2.msra.mxu0 0.0
      %1398 = vmatprep.subr.mxu0 0.0
      %1399 = vmatpush2.msra.mxu0 0.0
      %1400 = vmatprep.subr.mxu0 0.0
      %1401 = vmatpush2.msra.mxu0 0.0
      %1402 = vmatprep.subr.mxu0 0.0
      %1403 = vmatpush2.msra.mxu0 0.0
      %1404 = vmatprep.subr.mxu0 0.0
      %1405 = vmatpush2.msra.mxu0 0.0
      %1406 = vmatprep.subr.mxu0 0.0
      %1407 = vmatpush2.msra.mxu0 0.0
      %1408 = vmatprep.subr.mxu0 0.0
      %1409 = vmatpush2.msra.mxu0 0.0
      %1410 = vmatprep.subr.mxu0 0.0
      %1411 = vmatpush2.msra.mxu0 0.0
      %1412 = vmatprep.subr.mxu0 0.0
      %1413 = vmatpush2.msra.mxu0 0.0
      %1414 = vmatprep.subr.mxu0 0.0
      %1415 = vmatpush2.msra.mxu0 0.0
      %1416 = vmatprep.subr.mxu0 0.0
      %1417 = vmatpush2.msra.mxu0 0.0
      %1418 = vmatprep.subr.mxu0 0.0
      %1419 = vmatpush2.msra.mxu0 0.0
      %1420 = vmatprep.subr.mxu0 0.0
      %1421 = vmatpush2.msra.mxu0 0.0
      %1422 = vmatprep.subr.mxu0 0.0
      %1423 = vmatpush2.msra.mxu0 0.0
      %1424 = vmatprep.subr.mxu0 0.0
      %1425 = vmatpush2.msra.mxu0 0.0
      %1426 = vmatprep.subr.mxu0 0.0
      %1427 = vmatpush2.msra.mxu0 0.0
      %1428 = vmatprep.mubr.f32.mxu0 0.0
      %1429 = vmatmul.mubr.f32.gmra.mxu0 %v1345
      %v1430 = vpop.f32.mrf.mxu0
      %v1431 = vadd.f32 %v1229, %v1430
      %v1432 = vpop.f32.mrf.mxu0
      %v1433 = vadd.f32 %v1231, %v1432
      %1434 = vmatprep.mubr.f32.mxu0 0.0
      %1435 = vmatmul.mubr.f32.gmra.mxu0 %v1348
      %v1436 = vpop.f32.mrf.mxu0
      %v1437 = vadd.f32 %v1235, %v1436
      %v1438 = vpop.f32.mrf.mxu0
      %v1439 = vadd.f32 %v1237, %v1438
      %1440 = vmatprep.mubr.f32.mxu0 0.0
      %1441 = vmatmul.mubr.f32.gmra.mxu0 %v1351
      %v1442 = vpop.f32.mrf.mxu0
      %v1443 = vadd.f32 %v1241, %v1442
      %v1444 = vpop.f32.mrf.mxu0
      %v1445 = vadd.f32 %v1243, %v1444
      %1446 = vmatprep.mubr.f32.mxu0 0.0
      %1447 = vmatmul.mubr.f32.gmra.mxu0 %v1354
      %v1448 = vpop.f32.mrf.mxu0
      %v1449 = vadd.f32 %v1247, %v1448
      %v1450 = vpop.f32.mrf.mxu0
      %v1451 = vadd.f32 %v1249, %v1450
      %1452 = vdwg.mxu0
      %1453 = vmatprep.subr.mxu0 0.0
      %1454 = vmatpush1.msra.mxu0 0.0
      %1455 = vmatprep.subr.mxu0 0.0
      %1456 = vmatpush1.msra.mxu0 0.0
      %1457 = vmatprep.subr.mxu0 0.0
      %1458 = vmatpush1.msra.mxu0 0.0
      %1459 = vmatprep.subr.mxu0 0.0
      %1460 = vmatpush1.msra.mxu0 0.0
      %1461 = vmatprep.subr.mxu0 0.0
      %1462 = vmatpush1.msra.mxu0 0.0
      %1463 = vmatprep.subr.mxu0 0.0
      %1464 = vmatpush1.msra.mxu0 0.0
      %1465 = vmatprep.subr.mxu0 0.0
      %1466 = vmatpush1.msra.mxu0 0.0
      %1467 = vmatprep.subr.mxu0 0.0
      %1468 = vmatpush1.msra.mxu0 0.0
      %1469 = vmatprep.subr.mxu0 0.0
      %1470 = vmatpush1.msra.mxu0 0.0
      %1471 = vmatprep.subr.mxu0 0.0
      %1472 = vmatpush1.msra.mxu0 0.0
      %1473 = vmatprep.subr.mxu0 0.0
      %1474 = vmatpush1.msra.mxu0 0.0
      %1475 = vmatprep.subr.mxu0 0.0
      %1476 = vmatpush1.msra.mxu0 0.0
      %1477 = vmatprep.subr.mxu0 0.0
      %1478 = vmatpush1.msra.mxu0 0.0
      %1479 = vmatprep.subr.mxu0 0.0
      %1480 = vmatpush1.msra.mxu0 0.0
      %1481 = vmatprep.subr.mxu0 0.0
      %1482 = vmatpush1.msra.mxu0 0.0
      %1483 = vmatprep.subr.mxu0 %v1362
      %1484 = vmatpush1.msra.mxu0 %v1360
      %1485 = vmatprep.subr.mxu0 0.0
      %1486 = vmatpush2.msra.mxu0 0.0
      %1487 = vmatprep.subr.mxu0 0.0
      %1488 = vmatpush2.msra.mxu0 0.0
      %1489 = vmatprep.subr.mxu0 0.0
      %1490 = vmatpush2.msra.mxu0 0.0
      %1491 = vmatprep.subr.mxu0 0.0
      %1492 = vmatpush2.msra.mxu0 0.0
      %1493 = vmatprep.subr.mxu0 0.0
      %1494 = vmatpush2.msra.mxu0 0.0
      %1495 = vmatprep.subr.mxu0 0.0
      %1496 = vmatpush2.msra.mxu0 0.0
      %1497 = vmatprep.subr.mxu0 0.0
      %1498 = vmatpush2.msra.mxu0 0.0
      %1499 = vmatprep.subr.mxu0 0.0
      %1500 = vmatpush2.msra.mxu0 0.0
      %1501 = vmatprep.subr.mxu0 0.0
      %1502 = vmatpush2.msra.mxu0 0.0
      %1503 = vmatprep.subr.mxu0 0.0
      %1504 = vmatpush2.msra.mxu0 0.0
      %1505 = vmatprep.subr.mxu0 0.0
      %1506 = vmatpush2.msra.mxu0 0.0
      %1507 = vmatprep.subr.mxu0 0.0
      %1508 = vmatpush2.msra.mxu0 0.0
      %1509 = vmatprep.subr.mxu0 0.0
      %1510 = vmatpush2.msra.mxu0 0.0
      %1511 = vmatprep.subr.mxu0 0.0
      %1512 = vmatpush2.msra.mxu0 0.0
      %1513 = vmatprep.subr.mxu0 0.0
      %1514 = vmatpush2.msra.mxu0 0.0
      %1515 = vmatprep.subr.mxu0 0.0
      %1516 = vmatpush2.msra.mxu0 0.0
      %1517 = vmatprep.mubr.f32.mxu0 0.0
      %1518 = vmatmul.mubr.f32.gmra.mxu0 %v1345
      %v1519 = vpop.f32.mrf.mxu0
      %v1520 = vadd.f32 %v1318, %v1519
      %v1521 = vpop.f32.mrf.mxu0
      %v1522 = vadd.f32 %v1320, %v1521
      %1523 = vmatprep.mubr.f32.mxu0 0.0
      %1524 = vmatmul.mubr.f32.gmra.mxu0 %v1348
      %v1525 = vpop.f32.mrf.mxu0
      %v1526 = vadd.f32 %v1324, %v1525
      %v1527 = vpop.f32.mrf.mxu0
      %v1528 = vadd.f32 %v1326, %v1527
      %1529 = vmatprep.mubr.f32.mxu0 0.0
      %1530 = vmatmul.mubr.f32.gmra.mxu0 %v1351
      %v1531 = vpop.f32.mrf.mxu0
      %v1532 = vadd.f32 %v1330, %v1531
      %v1533 = vpop.f32.mrf.mxu0
      %v1534 = vadd.f32 %v1332, %v1533
      %1535 = vmatprep.mubr.f32.mxu0 0.0
      %1536 = vmatmul.mubr.f32.gmra.mxu0 %v1354
      %v1537 = vpop.f32.mrf.mxu0
      %v1538 = vadd.f32 %v1336, %v1537
      %v1539 = vpop.f32.mrf.mxu0
      %v1540 = vadd.f32 %v1338, %v1539
      %1541 = vdwg.mxu0
      %v1542 = vadd.f32 %v869, %v1431
      %v1543 = vadd.f32 %v871, %v1433
      %v1544 = vadd.f32 %v958, %v1520
      %v1545 = vadd.f32 %v960, %v1522
      %v1546 = vadd.f32 %v875, %v1437
      %v1547 = vadd.f32 %v877, %v1439
      %v1548 = vadd.f32 %v964, %v1526
      %v1549 = vadd.f32 %v966, %v1528
      %v1550 = vadd.f32 %v881, %v1443
      %v1551 = vadd.f32 %v883, %v1445
      %v1552 = vadd.f32 %v970, %v1532
      %v1553 = vadd.f32 %v972, %v1534
      %v1554 = vadd.f32 %v887, %v1449
      %v1555 = vadd.f32 %v889, %v1451
      %v1556 = vadd.f32 %v976, %v1538
      %v1557 = vadd.f32 %v978, %v1540
      %v1558 = vld [vmem:[%s7] sm:$0xff]
      %v1559 = vld [vmem:[%s7 + $0x8] sm:$0xff]
      %v1560 = vld [vmem:[%s7 + $0x10] sm:$0xff]
      %v1561 = vld [vmem:[%s7 + $0x18] sm:$0xff]
      %v1562 = vld [vmem:[%s7 + $0x20] sm:$0xff]
      %v1563 = vld [vmem:[%s7 + $0x28] sm:$0xff]
      %v1564 = vld [vmem:[%s7 + $0x30] sm:$0xff]
      %v1565 = vld [vmem:[%s7 + $0x38] sm:$0xff]
      %v1566 = vld [vmem:[%s7 + $0x40] sm:$0xff]
      %v1567 = vld [vmem:[%s7 + $0x48] sm:$0xff]
      %v1568 = vld [vmem:[%s7 + $0x50] sm:$0xff]
      %v1569 = vld [vmem:[%s7 + $0x58] sm:$0xff]
      %v1570 = vld [vmem:[%s7 + $0x60] sm:$0xff]
      %v1571 = vld [vmem:[%s7 + $0x68] sm:$0xff]
      %v1572 = vld [vmem:[%s7 + $0x70] sm:$0xff]
      %v1573 = vld [vmem:[%s7 + $0x78] sm:$0xff]
      %v1574 = vld [vmem:[%s9] sm:$0xff]
      %v1575 = vld [vmem:[%s9 + $0x8] sm:$0xff]
      %v1576 = vld [vmem:[%s9 + $0x10] sm:$0xff]
      %v1577 = vld [vmem:[%s9 + $0x18] sm:$0xff]
      %v1578 = vmul.f32 %v1558, %v1542
      %v1579 = vmul.f32 %v1559, %v1543
      %v1580 = vmul.f32 %v1560, %v1544
      %v1581 = vmul.f32 %v1561, %v1545
      %v1582 = vmul.f32 %v1562, %v1546
      %v1583 = vmul.f32 %v1563, %v1547
      %v1584 = vmul.f32 %v1564, %v1548
      %v1585 = vmul.f32 %v1565, %v1549
      %v1586 = vmul.f32 %v1566, %v1550
      %v1587 = vmul.f32 %v1567, %v1551
      %v1588 = vmul.f32 %v1568, %v1552
      %v1589 = vmul.f32 %v1569, %v1553
      %v1590 = vmul.f32 %v1570, %v1554
      %v1591 = vmul.f32 %v1571, %v1555
      %v1592 = vmul.f32 %v1572, %v1556
      %v1593 = vmul.f32 %v1573, %v1557
      %v1594 = vadd.f32 %v1574, %v1578
      %v1595 = vadd.f32 %v1575, %v1582
      %v1596 = vadd.f32 %v1576, %v1586
      %v1597 = vadd.f32 %v1577, %v1590
      %1602 = vrot.lane.b32.xlu0 %v1578, 64
      %v1603 = vpop.permute.xlu0 %1602
      %1604 = vrot.lane.b32.xlu0 %v1582, 64
      %v1605 = vpop.permute.xlu0 %1604
      %1606 = vrot.lane.b32.xlu0 %v1586, 64
      %v1607 = vpop.permute.xlu0 %1606
      %1608 = vrot.lane.b32.xlu0 %v1590, 64
      %v1609 = vpop.permute.xlu0 %1608
      %v1614 = vadd.f32 %v1594, %v1603
      %v1615 = vadd.f32 %v1595, %v1605
      %v1616 = vadd.f32 %v1596, %v1607
      %v1617 = vadd.f32 %v1597, %v1609
      %v1618 = vadd.f32 %v1614, %v1579
      %v1619 = vadd.f32 %v1615, %v1583
      %v1620 = vadd.f32 %v1616, %v1587
      %v1621 = vadd.f32 %v1617, %v1591
      %1626 = vrot.lane.b32.xlu0 %v1579, 64
      %v1627 = vpop.permute.xlu0 %1626
      %1628 = vrot.lane.b32.xlu0 %v1583, 64
      %v1629 = vpop.permute.xlu0 %1628
      %1630 = vrot.lane.b32.xlu0 %v1587, 64
      %v1631 = vpop.permute.xlu0 %1630
      %1632 = vrot.lane.b32.xlu0 %v1591, 64
      %v1633 = vpop.permute.xlu0 %1632
      %v1638 = vadd.f32 %v1618, %v1627
      %v1639 = vadd.f32 %v1619, %v1629
      %v1640 = vadd.f32 %v1620, %v1631
      %v1641 = vadd.f32 %v1621, %v1633
      %v1642 = vadd.f32 %v1638, %v1580
      %v1643 = vadd.f32 %v1639, %v1584
      %v1644 = vadd.f32 %v1640, %v1588
      %v1645 = vadd.f32 %v1641, %v1592
      %1650 = vrot.lane.b32.xlu0 %v1580, 64
      %v1651 = vpop.permute.xlu0 %1650
      %1652 = vrot.lane.b32.xlu0 %v1584, 64
      %v1653 = vpop.permute.xlu0 %1652
      %1654 = vrot.lane.b32.xlu0 %v1588, 64
      %v1655 = vpop.permute.xlu0 %1654
      %1656 = vrot.lane.b32.xlu0 %v1592, 64
      %v1657 = vpop.permute.xlu0 %1656
      %v1662 = vadd.f32 %v1642, %v1651
      %v1663 = vadd.f32 %v1643, %v1653
      %v1664 = vadd.f32 %v1644, %v1655
      %v1665 = vadd.f32 %v1645, %v1657
      %v1666 = vadd.f32 %v1662, %v1581
      %v1667 = vadd.f32 %v1663, %v1585
      %v1668 = vadd.f32 %v1664, %v1589
      %v1669 = vadd.f32 %v1665, %v1593
      %1674 = vrot.lane.b32.xlu0 %v1581, 64
      %v1675 = vpop.permute.xlu0 %1674
      %1676 = vrot.lane.b32.xlu0 %v1585, 64
      %v1677 = vpop.permute.xlu0 %1676
      %1678 = vrot.lane.b32.xlu0 %v1589, 64
      %v1679 = vpop.permute.xlu0 %1678
      %1680 = vrot.lane.b32.xlu0 %v1593, 64
      %v1681 = vpop.permute.xlu0 %1680
      %v1686 = vadd.f32 %v1666, %v1675
      %v1687 = vadd.f32 %v1667, %v1677
      %v1688 = vadd.f32 %v1668, %v1679
      %v1689 = vadd.f32 %v1669, %v1681
      %v1690 = vxor.u32 %v1686, 2147483648
      %v1691 = vxor.u32 %v1687, 2147483648
      %v1692 = vxor.u32 %v1688, 2147483648
      %v1693 = vxor.u32 %v1689, 2147483648
      %v1694 = vmul.f32 %v1690, 1.442695
      %v1695 = vpow.pop %v1694
      %v1696 = vmul.f32 %v1691, 1.442695
      %v1697 = vpow.pop %v1696
      %v1698 = vmul.f32 %v1692, 1.442695
      %v1699 = vpow.pop %v1698
      %v1700 = vmul.f32 %v1693, 1.442695
      %v1701 = vpow.pop %v1700
      %v1702 = vadd.f32 %v1695, 1.0
      %v1703 = vadd.f32 %v1697, 1.0
      %v1704 = vadd.f32 %v1699, 1.0
      %v1705 = vadd.f32 %v1701, 1.0
      %v1706 = vrcp.pop %v1702
      %v1707 = vmul.f32 1.0, %v1706
      %v1708 = vrcp.pop %v1703
      %v1709 = vmul.f32 1.0, %v1708
      %v1710 = vrcp.pop %v1704
      %v1711 = vmul.f32 1.0, %v1710
      %v1712 = vrcp.pop %v1705
      %v1713 = vmul.f32 1.0, %v1712
      %v1714 = vmul.f32 %v1707, %v404
      %v1715 = vmul.f32 %v1709, %v405
      %v1716 = vmul.f32 %v1711, %v406
      %v1717 = vmul.f32 %v1713, %v407
      %v1718 = vld [vmem:[%s5] sm:$0xff]
      %v1719 = vld [vmem:[%s6] sm:$0xff]
      %v1720 = vld [vmem:[%s6 + $0x8] sm:$0xff]
      %v1721 = vld [vmem:[%s6 + $0x10] sm:$0xff]
      %v1722 = vld [vmem:[%s6 + $0x18] sm:$0xff]
      %v1723 = vld [vmem:[%s6 + $0x20] sm:$0xff]
      %v1724 = vld [vmem:[%s6 + $0x28] sm:$0xff]
      %v1725 = vld [vmem:[%s6 + $0x30] sm:$0xff]
      %v1726 = vld [vmem:[%s6 + $0x38] sm:$0xff]
      %v1728 = vsel %vm585, %v1714, 0
      %v1731 = vsel %vm585, %v1715, 0
      %v1734 = vsel %vm585, %v1716, 0
      %v1737 = vsel %vm585, %v1717, 0
      %1739 = vmatprep.subr.mxu0 0.0
      %1740 = vmatpush1.msra.mxu0 0.0
      %1741 = vmatprep.subr.mxu0 0.0
      %1742 = vmatpush1.msra.mxu0 0.0
      %1743 = vmatprep.subr.mxu0 0.0
      %1744 = vmatpush1.msra.mxu0 0.0
      %1745 = vmatprep.subr.mxu0 0.0
      %1746 = vmatpush1.msra.mxu0 0.0
      %1747 = vmatprep.subr.mxu0 0.0
      %1748 = vmatpush1.msra.mxu0 0.0
      %1749 = vmatprep.subr.mxu0 0.0
      %1750 = vmatpush1.msra.mxu0 0.0
      %1751 = vmatprep.subr.mxu0 0.0
      %1752 = vmatpush1.msra.mxu0 0.0
      %1753 = vmatprep.subr.mxu0 0.0
      %1754 = vmatpush1.msra.mxu0 0.0
      %1755 = vmatprep.subr.mxu0 0.0
      %1756 = vmatpush1.msra.mxu0 0.0
      %1757 = vmatprep.subr.mxu0 0.0
      %1758 = vmatpush1.msra.mxu0 0.0
      %1759 = vmatprep.subr.mxu0 0.0
      %1760 = vmatpush1.msra.mxu0 0.0
      %1761 = vmatprep.subr.mxu0 0.0
      %1762 = vmatpush1.msra.mxu0 0.0
      %1763 = vmatprep.subr.mxu0 %v1726
      %1764 = vmatpush1.msra.mxu0 %v1725
      %1765 = vmatprep.subr.mxu0 %v1724
      %1766 = vmatpush1.msra.mxu0 %v1723
      %1767 = vmatprep.subr.mxu0 %v1722
      %1768 = vmatpush1.msra.mxu0 %v1721
      %1769 = vmatprep.subr.mxu0 %v1720
      %1770 = vmatpush1.msra.mxu0 %v1719
      %1771 = vmatprep.subr.mxu0 0.0
      %1772 = vmatpush2.msra.mxu0 0.0
      %1773 = vmatprep.subr.mxu0 0.0
      %1774 = vmatpush2.msra.mxu0 0.0
      %1775 = vmatprep.subr.mxu0 0.0
      %1776 = vmatpush2.msra.mxu0 0.0
      %1777 = vmatprep.subr.mxu0 0.0
      %1778 = vmatpush2.msra.mxu0 0.0
      %1779 = vmatprep.subr.mxu0 0.0
      %1780 = vmatpush2.msra.mxu0 0.0
      %1781 = vmatprep.subr.mxu0 0.0
      %1782 = vmatpush2.msra.mxu0 0.0
      %1783 = vmatprep.subr.mxu0 0.0
      %1784 = vmatpush2.msra.mxu0 0.0
      %1785 = vmatprep.subr.mxu0 0.0
      %1786 = vmatpush2.msra.mxu0 0.0
      %1787 = vmatprep.subr.mxu0 0.0
      %1788 = vmatpush2.msra.mxu0 0.0
      %1789 = vmatprep.subr.mxu0 0.0
      %1790 = vmatpush2.msra.mxu0 0.0
      %1791 = vmatprep.subr.mxu0 0.0
      %1792 = vmatpush2.msra.mxu0 0.0
      %1793 = vmatprep.subr.mxu0 0.0
      %1794 = vmatpush2.msra.mxu0 0.0
      %1795 = vmatprep.subr.mxu0 0.0
      %1796 = vmatpush2.msra.mxu0 0.0
      %1797 = vmatprep.subr.mxu0 0.0
      %1798 = vmatpush2.msra.mxu0 0.0
      %1799 = vmatprep.subr.mxu0 0.0
      %1800 = vmatpush2.msra.mxu0 0.0
      %1801 = vmatprep.subr.mxu0 0.0
      %1802 = vmatpush2.msra.mxu0 0.0
      %1803 = vmatprep.mubr.f32.mxu0 0.0
      %1804 = vmatmul.mubr.f32.gmra.mxu0 %v1728
      %v1805 = vpop.f32.mrf.mxu0
      %v1806 = vadd.f32 0.0, %v1805
      %v1807 = vpop.f32.mrf.mxu0
      %v1808 = vadd.f32 0.0, %v1807
      %1809 = vmatprep.mubr.f32.mxu0 0.0
      %1810 = vmatmul.mubr.f32.gmra.mxu0 %v1731
      %v1811 = vpop.f32.mrf.mxu0
      %v1812 = vadd.f32 0.0, %v1811
      %v1813 = vpop.f32.mrf.mxu0
      %v1814 = vadd.f32 0.0, %v1813
      %1815 = vmatprep.mubr.f32.mxu0 0.0
      %1816 = vmatmul.mubr.f32.gmra.mxu0 %v1734
      %v1817 = vpop.f32.mrf.mxu0
      %v1818 = vadd.f32 0.0, %v1817
      %v1819 = vpop.f32.mrf.mxu0
      %v1820 = vadd.f32 0.0, %v1819
      %1821 = vmatprep.mubr.f32.mxu0 0.0
      %1822 = vmatmul.mubr.f32.gmra.mxu0 %v1737
      %v1823 = vpop.f32.mrf.mxu0
      %v1824 = vadd.f32 0.0, %v1823
      %v1825 = vpop.f32.mrf.mxu0
      %v1826 = vadd.f32 0.0, %v1825
      %1827 = vdwg.mxu0
      %v1829 = vcombine.high %v1718, %v1718
      %v1830 = vsel %vm793, %v1718, 0
      %v1832 = vsel %vm793, %v1829, 0
      %1834 = vmatprep.subr.mxu0 0.0
      %1835 = vmatpush1.msra.mxu0 0.0
      %1836 = vmatprep.subr.mxu0 0.0
      %1837 = vmatpush1.msra.mxu0 0.0
      %1838 = vmatprep.subr.mxu0 0.0
      %1839 = vmatpush1.msra.mxu0 0.0
      %1840 = vmatprep.subr.mxu0 0.0
      %1841 = vmatpush1.msra.mxu0 0.0
      %1842 = vmatprep.subr.mxu0 0.0
      %1843 = vmatpush1.msra.mxu0 0.0
      %1844 = vmatprep.subr.mxu0 0.0
      %1845 = vmatpush1.msra.mxu0 0.0
      %1846 = vmatprep.subr.mxu0 0.0
      %1847 = vmatpush1.msra.mxu0 0.0
      %1848 = vmatprep.subr.mxu0 0.0
      %1849 = vmatpush1.msra.mxu0 0.0
      %1850 = vmatprep.subr.mxu0 0.0
      %1851 = vmatpush1.msra.mxu0 0.0
      %1852 = vmatprep.subr.mxu0 0.0
      %1853 = vmatpush1.msra.mxu0 0.0
      %1854 = vmatprep.subr.mxu0 0.0
      %1855 = vmatpush1.msra.mxu0 0.0
      %1856 = vmatprep.subr.mxu0 0.0
      %1857 = vmatpush1.msra.mxu0 0.0
      %1858 = vmatprep.subr.mxu0 0.0
      %1859 = vmatpush1.msra.mxu0 0.0
      %1860 = vmatprep.subr.mxu0 0.0
      %1861 = vmatpush1.msra.mxu0 0.0
      %1862 = vmatprep.subr.mxu0 0.0
      %1863 = vmatpush1.msra.mxu0 0.0
      %1864 = vmatprep.subr.mxu0 %v1832
      %1865 = vmatpush1.msra.mxu0 %v1830
      %1866 = vmatprep.subr.mxu0 0.0
      %1867 = vmatpush2.msra.mxu0 0.0
      %1868 = vmatprep.subr.mxu0 0.0
      %1869 = vmatpush2.msra.mxu0 0.0
      %1870 = vmatprep.subr.mxu0 0.0
      %1871 = vmatpush2.msra.mxu0 0.0
      %1872 = vmatprep.subr.mxu0 0.0
      %1873 = vmatpush2.msra.mxu0 0.0
      %1874 = vmatprep.subr.mxu0 0.0
      %1875 = vmatpush2.msra.mxu0 0.0
      %1876 = vmatprep.subr.mxu0 0.0
      %1877 = vmatpush2.msra.mxu0 0.0
      %1878 = vmatprep.subr.mxu0 0.0
      %1879 = vmatpush2.msra.mxu0 0.0
      %1880 = vmatprep.subr.mxu0 0.0
      %1881 = vmatpush2.msra.mxu0 0.0
      %1882 = vmatprep.subr.mxu0 0.0
      %1883 = vmatpush2.msra.mxu0 0.0
      %1884 = vmatprep.subr.mxu0 0.0
      %1885 = vmatpush2.msra.mxu0 0.0
      %1886 = vmatprep.subr.mxu0 0.0
      %1887 = vmatpush2.msra.mxu0 0.0
      %1888 = vmatprep.subr.mxu0 0.0
      %1889 = vmatpush2.msra.mxu0 0.0
      %1890 = vmatprep.subr.mxu0 0.0
      %1891 = vmatpush2.msra.mxu0 0.0
      %1892 = vmatprep.subr.mxu0 0.0
      %1893 = vmatpush2.msra.mxu0 0.0
      %1894 = vmatprep.subr.mxu0 0.0
      %1895 = vmatpush2.msra.mxu0 0.0
      %1896 = vmatprep.subr.mxu0 0.0
      %1897 = vmatpush2.msra.mxu0 0.0
      %1898 = vmatprep.mubr.f32.mxu0 0.0
      %1899 = vmatmul.mubr.f32.gmra.mxu0 %v782
      %v1900 = vpop.f32.mrf.mxu0
      %v1901 = vadd.f32 %v1806, %v1900
      %v1902 = vpop.f32.mrf.mxu0
      %v1903 = vadd.f32 %v1808, %v1902
      %1904 = vmatprep.mubr.f32.mxu0 0.0
      %1905 = vmatmul.mubr.f32.gmra.mxu0 %v785
      %v1906 = vpop.f32.mrf.mxu0
      %v1907 = vadd.f32 %v1812, %v1906
      %v1908 = vpop.f32.mrf.mxu0
      %v1909 = vadd.f32 %v1814, %v1908
      %1910 = vmatprep.mubr.f32.mxu0 0.0
      %1911 = vmatmul.mubr.f32.gmra.mxu0 %v788
      %v1912 = vpop.f32.mrf.mxu0
      %v1913 = vadd.f32 %v1818, %v1912
      %v1914 = vpop.f32.mrf.mxu0
      %v1915 = vadd.f32 %v1820, %v1914
      %1916 = vmatprep.mubr.f32.mxu0 0.0
      %1917 = vmatmul.mubr.f32.gmra.mxu0 %v791
      %v1918 = vpop.f32.mrf.mxu0
      %v1919 = vadd.f32 %v1824, %v1918
      %v1920 = vpop.f32.mrf.mxu0
      %v1921 = vadd.f32 %v1826, %v1920
      %1922 = vdwg.mxu0
      %1923 = vmatprep.subr.mxu0 0.0
      %1924 = vmatpush1.msra.mxu0 0.0
      %1925 = vmatprep.subr.mxu0 0.0
      %1926 = vmatpush1.msra.mxu0 0.0
      %1927 = vmatprep.subr.mxu0 0.0
      %1928 = vmatpush1.msra.mxu0 0.0
      %1929 = vmatprep.subr.mxu0 0.0
      %1930 = vmatpush1.msra.mxu0 0.0
      %1931 = vmatprep.subr.mxu0 0.0
      %1932 = vmatpush1.msra.mxu0 0.0
      %1933 = vmatprep.subr.mxu0 0.0
      %1934 = vmatpush1.msra.mxu0 0.0
      %1935 = vmatprep.subr.mxu0 0.0
      %1936 = vmatpush1.msra.mxu0 0.0
      %1937 = vmatprep.subr.mxu0 0.0
      %1938 = vmatpush1.msra.mxu0 0.0
      %1939 = vmatprep.subr.mxu0 0.0
      %1940 = vmatpush1.msra.mxu0 0.0
      %1941 = vmatprep.subr.mxu0 0.0
      %1942 = vmatpush1.msra.mxu0 0.0
      %1943 = vmatprep.subr.mxu0 0.0
      %1944 = vmatpush1.msra.mxu0 0.0
      %1945 = vmatprep.subr.mxu0 0.0
      %1946 = vmatpush1.msra.mxu0 0.0
      %1947 = vmatprep.subr.mxu0 0.0
      %1948 = vmatpush1.msra.mxu0 0.0
      %1949 = vmatprep.subr.mxu0 0.0
      %1950 = vmatpush1.msra.mxu0 0.0
      %1951 = vmatprep.subr.mxu0 0.0
      %1952 = vmatpush1.msra.mxu0 %v1715
      %1953 = vmatprep.subr.mxu0 0.0
      %1954 = vmatpush1.msra.mxu0 %v1714
      %1955 = vmatprep.subr.mxu0 0.0
      %1956 = vmatpush2.msra.mxu0 0.0
      %1957 = vmatprep.subr.mxu0 0.0
      %1958 = vmatpush2.msra.mxu0 0.0
      %1959 = vmatprep.subr.mxu0 0.0
      %1960 = vmatpush2.msra.mxu0 0.0
      %1961 = vmatprep.subr.mxu0 0.0
      %1962 = vmatpush2.msra.mxu0 0.0
      %1963 = vmatprep.subr.mxu0 0.0
      %1964 = vmatpush2.msra.mxu0 0.0
      %1965 = vmatprep.subr.mxu0 0.0
      %1966 = vmatpush2.msra.mxu0 0.0
      %1967 = vmatprep.subr.mxu0 0.0
      %1968 = vmatpush2.msra.mxu0 0.0
      %1969 = vmatprep.subr.mxu0 0.0
      %1970 = vmatpush2.msra.mxu0 0.0
      %1971 = vmatprep.subr.mxu0 0.0
      %1972 = vmatpush2.msra.mxu0 0.0
      %1973 = vmatprep.subr.mxu0 0.0
      %1974 = vmatpush2.msra.mxu0 0.0
      %1975 = vmatprep.subr.mxu0 0.0
      %1976 = vmatpush2.msra.mxu0 0.0
      %1977 = vmatprep.subr.mxu0 0.0
      %1978 = vmatpush2.msra.mxu0 0.0
      %1979 = vmatprep.subr.mxu0 0.0
      %1980 = vmatpush2.msra.mxu0 0.0
      %1981 = vmatprep.subr.mxu0 0.0
      %1982 = vmatpush2.msra.mxu0 0.0
      %1983 = vmatprep.subr.mxu0 0.0
      %1984 = vmatpush2.msra.mxu0 0.0
      %1985 = vmatprep.subr.mxu0 0.0
      %1986 = vmatpush2.msra.mxu0 0.0
      %1987 = vmatprep.mubr.f32.mxu0 0.0
      %1988 = vmatmul.mubr.f32.gmra.mxu0 %v412
      %v1989 = vpop.f32.mrf.mxu0
      %v1990 = vadd.f32 0.0, %v1989
      %v1991 = vpop.f32.mrf.mxu0
      %1992 = vmatprep.mubr.f32.mxu0 0.0
      %1993 = vmatmul.mubr.f32.gmra.mxu0 %v415
      %v1994 = vpop.f32.mrf.mxu0
      %v1995 = vadd.f32 0.0, %v1994
      %v1996 = vpop.f32.mrf.mxu0
      %1997 = vdwg.mxu0
      %1998 = vmatprep.subr.mxu0 0.0
      %1999 = vmatpush1.msra.mxu0 0.0
      %2000 = vmatprep.subr.mxu0 0.0
      %2001 = vmatpush1.msra.mxu0 0.0
      %2002 = vmatprep.subr.mxu0 0.0
      %2003 = vmatpush1.msra.mxu0 0.0
      %2004 = vmatprep.subr.mxu0 0.0
      %2005 = vmatpush1.msra.mxu0 0.0
      %2006 = vmatprep.subr.mxu0 0.0
      %2007 = vmatpush1.msra.mxu0 0.0
      %2008 = vmatprep.subr.mxu0 0.0
      %2009 = vmatpush1.msra.mxu0 0.0
      %2010 = vmatprep.subr.mxu0 0.0
      %2011 = vmatpush1.msra.mxu0 0.0
      %2012 = vmatprep.subr.mxu0 0.0
      %2013 = vmatpush1.msra.mxu0 0.0
      %2014 = vmatprep.subr.mxu0 0.0
      %2015 = vmatpush1.msra.mxu0 0.0
      %2016 = vmatprep.subr.mxu0 0.0
      %2017 = vmatpush1.msra.mxu0 0.0
      %2018 = vmatprep.subr.mxu0 0.0
      %2019 = vmatpush1.msra.mxu0 0.0
      %2020 = vmatprep.subr.mxu0 0.0
      %2021 = vmatpush1.msra.mxu0 0.0
      %2022 = vmatprep.subr.mxu0 0.0
      %2023 = vmatpush1.msra.mxu0 0.0
      %2024 = vmatprep.subr.mxu0 0.0
      %2025 = vmatpush1.msra.mxu0 0.0
      %2026 = vmatprep.subr.mxu0 0.0
      %2027 = vmatpush1.msra.mxu0 %v1717
      %2028 = vmatprep.subr.mxu0 0.0
      %2029 = vmatpush1.msra.mxu0 %v1716
      %2030 = vmatprep.subr.mxu0 0.0
      %2031 = vmatpush2.msra.mxu0 0.0
      %2032 = vmatprep.subr.mxu0 0.0
      %2033 = vmatpush2.msra.mxu0 0.0
      %2034 = vmatprep.subr.mxu0 0.0
      %2035 = vmatpush2.msra.mxu0 0.0
      %2036 = vmatprep.subr.mxu0 0.0
      %2037 = vmatpush2.msra.mxu0 0.0
      %2038 = vmatprep.subr.mxu0 0.0
      %2039 = vmatpush2.msra.mxu0 0.0
      %2040 = vmatprep.subr.mxu0 0.0
      %2041 = vmatpush2.msra.mxu0 0.0
      %2042 = vmatprep.subr.mxu0 0.0
      %2043 = vmatpush2.msra.mxu0 0.0
      %2044 = vmatprep.subr.mxu0 0.0
      %2045 = vmatpush2.msra.mxu0 0.0
      %2046 = vmatprep.subr.mxu0 0.0
      %2047 = vmatpush2.msra.mxu0 0.0
      %2048 = vmatprep.subr.mxu0 0.0
      %2049 = vmatpush2.msra.mxu0 0.0
      %2050 = vmatprep.subr.mxu0 0.0
      %2051 = vmatpush2.msra.mxu0 0.0
      %2052 = vmatprep.subr.mxu0 0.0
      %2053 = vmatpush2.msra.mxu0 0.0
      %2054 = vmatprep.subr.mxu0 0.0
      %2055 = vmatpush2.msra.mxu0 0.0
      %2056 = vmatprep.subr.mxu0 0.0
      %2057 = vmatpush2.msra.mxu0 0.0
      %2058 = vmatprep.subr.mxu0 0.0
      %2059 = vmatpush2.msra.mxu0 0.0
      %2060 = vmatprep.subr.mxu0 0.0
      %2061 = vmatpush2.msra.mxu0 0.0
      %2062 = vmatprep.mubr.f32.mxu0 0.0
      %2063 = vmatmul.mubr.f32.gmra.mxu0 %v412
      %v2064 = vpop.f32.mrf.mxu0
      %v2065 = vadd.f32 0.0, %v2064
      %v2066 = vpop.f32.mrf.mxu0
      %2067 = vmatprep.mubr.f32.mxu0 0.0
      %2068 = vmatmul.mubr.f32.gmra.mxu0 %v415
      %v2069 = vpop.f32.mrf.mxu0
      %v2070 = vadd.f32 0.0, %v2069
      %v2071 = vpop.f32.mrf.mxu0
      %2072 = vdwg.mxu0
      %s2073 = scalar_lea.vmem %s5, 8
      %v2074 = vld [vmem:[%s2073] sm:$0xff]
      %s2075 = scalar_lea.vmem %s6, 64
      %v2076 = vld [vmem:[%s2075] sm:$0xff]
      %v2077 = vld [vmem:[%s2075 + $0x8] sm:$0xff]
      %v2078 = vld [vmem:[%s2075 + $0x10] sm:$0xff]
      %v2079 = vld [vmem:[%s2075 + $0x18] sm:$0xff]
      %v2080 = vld [vmem:[%s2075 + $0x20] sm:$0xff]
      %v2081 = vld [vmem:[%s2075 + $0x28] sm:$0xff]
      %v2082 = vld [vmem:[%s2075 + $0x30] sm:$0xff]
      %v2083 = vld [vmem:[%s2075 + $0x38] sm:$0xff]
      %v2085 = vsel %vm585, %v1990, 0
      %v2088 = vsel %vm585, %v1995, 0
      %v2091 = vsel %vm585, %v2065, 0
      %v2094 = vsel %vm585, %v2070, 0
      %2096 = vmatprep.subr.mxu0 0.0
      %2097 = vmatpush1.msra.mxu0 0.0
      %2098 = vmatprep.subr.mxu0 0.0
      %2099 = vmatpush1.msra.mxu0 0.0
      %2100 = vmatprep.subr.mxu0 0.0
      %2101 = vmatpush1.msra.mxu0 0.0
      %2102 = vmatprep.subr.mxu0 0.0
      %2103 = vmatpush1.msra.mxu0 0.0
      %2104 = vmatprep.subr.mxu0 0.0
      %2105 = vmatpush1.msra.mxu0 0.0
      %2106 = vmatprep.subr.mxu0 0.0
      %2107 = vmatpush1.msra.mxu0 0.0
      %2108 = vmatprep.subr.mxu0 0.0
      %2109 = vmatpush1.msra.mxu0 0.0
      %2110 = vmatprep.subr.mxu0 0.0
      %2111 = vmatpush1.msra.mxu0 0.0
      %2112 = vmatprep.subr.mxu0 0.0
      %2113 = vmatpush1.msra.mxu0 0.0
      %2114 = vmatprep.subr.mxu0 0.0
      %2115 = vmatpush1.msra.mxu0 0.0
      %2116 = vmatprep.subr.mxu0 0.0
      %2117 = vmatpush1.msra.mxu0 0.0
      %2118 = vmatprep.subr.mxu0 0.0
      %2119 = vmatpush1.msra.mxu0 0.0
      %2120 = vmatprep.subr.mxu0 %v2083
      %2121 = vmatpush1.msra.mxu0 %v2082
      %2122 = vmatprep.subr.mxu0 %v2081
      %2123 = vmatpush1.msra.mxu0 %v2080
      %2124 = vmatprep.subr.mxu0 %v2079
      %2125 = vmatpush1.msra.mxu0 %v2078
      %2126 = vmatprep.subr.mxu0 %v2077
      %2127 = vmatpush1.msra.mxu0 %v2076
      %2128 = vmatprep.subr.mxu0 0.0
      %2129 = vmatpush2.msra.mxu0 0.0
      %2130 = vmatprep.subr.mxu0 0.0
      %2131 = vmatpush2.msra.mxu0 0.0
      %2132 = vmatprep.subr.mxu0 0.0
      %2133 = vmatpush2.msra.mxu0 0.0
      %2134 = vmatprep.subr.mxu0 0.0
      %2135 = vmatpush2.msra.mxu0 0.0
      %2136 = vmatprep.subr.mxu0 0.0
      %2137 = vmatpush2.msra.mxu0 0.0
      %2138 = vmatprep.subr.mxu0 0.0
      %2139 = vmatpush2.msra.mxu0 0.0
      %2140 = vmatprep.subr.mxu0 0.0
      %2141 = vmatpush2.msra.mxu0 0.0
      %2142 = vmatprep.subr.mxu0 0.0
      %2143 = vmatpush2.msra.mxu0 0.0
      %2144 = vmatprep.subr.mxu0 0.0
      %2145 = vmatpush2.msra.mxu0 0.0
      %2146 = vmatprep.subr.mxu0 0.0
      %2147 = vmatpush2.msra.mxu0 0.0
      %2148 = vmatprep.subr.mxu0 0.0
      %2149 = vmatpush2.msra.mxu0 0.0
      %2150 = vmatprep.subr.mxu0 0.0
      %2151 = vmatpush2.msra.mxu0 0.0
      %2152 = vmatprep.subr.mxu0 0.0
      %2153 = vmatpush2.msra.mxu0 0.0
      %2154 = vmatprep.subr.mxu0 0.0
      %2155 = vmatpush2.msra.mxu0 0.0
      %2156 = vmatprep.subr.mxu0 0.0
      %2157 = vmatpush2.msra.mxu0 0.0
      %2158 = vmatprep.subr.mxu0 0.0
      %2159 = vmatpush2.msra.mxu0 0.0
      %2160 = vmatprep.mubr.f32.mxu0 0.0
      %2161 = vmatmul.mubr.f32.gmra.mxu0 %v2085
      %v2162 = vpop.f32.mrf.mxu0
      %v2163 = vadd.f32 0.0, %v2162
      %v2164 = vpop.f32.mrf.mxu0
      %v2165 = vadd.f32 0.0, %v2164
      %2166 = vmatprep.mubr.f32.mxu0 0.0
      %2167 = vmatmul.mubr.f32.gmra.mxu0 %v2088
      %v2168 = vpop.f32.mrf.mxu0
      %v2169 = vadd.f32 0.0, %v2168
      %v2170 = vpop.f32.mrf.mxu0
      %v2171 = vadd.f32 0.0, %v2170
      %2172 = vmatprep.mubr.f32.mxu0 0.0
      %2173 = vmatmul.mubr.f32.gmra.mxu0 %v2091
      %v2174 = vpop.f32.mrf.mxu0
      %v2175 = vadd.f32 0.0, %v2174
      %v2176 = vpop.f32.mrf.mxu0
      %v2177 = vadd.f32 0.0, %v2176
      %2178 = vmatprep.mubr.f32.mxu0 0.0
      %2179 = vmatmul.mubr.f32.gmra.mxu0 %v2094
      %v2180 = vpop.f32.mrf.mxu0
      %v2181 = vadd.f32 0.0, %v2180
      %v2182 = vpop.f32.mrf.mxu0
      %v2183 = vadd.f32 0.0, %v2182
      %2184 = vdwg.mxu0
      %v2186 = vcombine.high %v2074, %v2074
      %v2187 = vsel %vm793, %v2074, 0
      %v2189 = vsel %vm793, %v2186, 0
      %2191 = vmatprep.subr.mxu0 0.0
      %2192 = vmatpush1.msra.mxu0 0.0
      %2193 = vmatprep.subr.mxu0 0.0
      %2194 = vmatpush1.msra.mxu0 0.0
      %2195 = vmatprep.subr.mxu0 0.0
      %2196 = vmatpush1.msra.mxu0 0.0
      %2197 = vmatprep.subr.mxu0 0.0
      %2198 = vmatpush1.msra.mxu0 0.0
      %2199 = vmatprep.subr.mxu0 0.0
      %2200 = vmatpush1.msra.mxu0 0.0
      %2201 = vmatprep.subr.mxu0 0.0
      %2202 = vmatpush1.msra.mxu0 0.0
      %2203 = vmatprep.subr.mxu0 0.0
      %2204 = vmatpush1.msra.mxu0 0.0
      %2205 = vmatprep.subr.mxu0 0.0
      %2206 = vmatpush1.msra.mxu0 0.0
      %2207 = vmatprep.subr.mxu0 0.0
      %2208 = vmatpush1.msra.mxu0 0.0
      %2209 = vmatprep.subr.mxu0 0.0
      %2210 = vmatpush1.msra.mxu0 0.0
      %2211 = vmatprep.subr.mxu0 0.0
      %2212 = vmatpush1.msra.mxu0 0.0
      %2213 = vmatprep.subr.mxu0 0.0
      %2214 = vmatpush1.msra.mxu0 0.0
      %2215 = vmatprep.subr.mxu0 0.0
      %2216 = vmatpush1.msra.mxu0 0.0
      %2217 = vmatprep.subr.mxu0 0.0
      %2218 = vmatpush1.msra.mxu0 0.0
      %2219 = vmatprep.subr.mxu0 0.0
      %2220 = vmatpush1.msra.mxu0 0.0
      %2221 = vmatprep.subr.mxu0 %v2189
      %2222 = vmatpush1.msra.mxu0 %v2187
      %2223 = vmatprep.subr.mxu0 0.0
      %2224 = vmatpush2.msra.mxu0 0.0
      %2225 = vmatprep.subr.mxu0 0.0
      %2226 = vmatpush2.msra.mxu0 0.0
      %2227 = vmatprep.subr.mxu0 0.0
      %2228 = vmatpush2.msra.mxu0 0.0
      %2229 = vmatprep.subr.mxu0 0.0
      %2230 = vmatpush2.msra.mxu0 0.0
      %2231 = vmatprep.subr.mxu0 0.0
      %2232 = vmatpush2.msra.mxu0 0.0
      %2233 = vmatprep.subr.mxu0 0.0
      %2234 = vmatpush2.msra.mxu0 0.0
      %2235 = vmatprep.subr.mxu0 0.0
      %2236 = vmatpush2.msra.mxu0 0.0
      %2237 = vmatprep.subr.mxu0 0.0
      %2238 = vmatpush2.msra.mxu0 0.0
      %2239 = vmatprep.subr.mxu0 0.0
      %2240 = vmatpush2.msra.mxu0 0.0
      %2241 = vmatprep.subr.mxu0 0.0
      %2242 = vmatpush2.msra.mxu0 0.0
      %2243 = vmatprep.subr.mxu0 0.0
      %2244 = vmatpush2.msra.mxu0 0.0
      %2245 = vmatprep.subr.mxu0 0.0
      %2246 = vmatpush2.msra.mxu0 0.0
      %2247 = vmatprep.subr.mxu0 0.0
      %2248 = vmatpush2.msra.mxu0 0.0
      %2249 = vmatprep.subr.mxu0 0.0
      %2250 = vmatpush2.msra.mxu0 0.0
      %2251 = vmatprep.subr.mxu0 0.0
      %2252 = vmatpush2.msra.mxu0 0.0
      %2253 = vmatprep.subr.mxu0 0.0
      %2254 = vmatpush2.msra.mxu0 0.0
      %2255 = vmatprep.mubr.f32.mxu0 0.0
      %2256 = vmatmul.mubr.f32.gmra.mxu0 %v1345
      %v2257 = vpop.f32.mrf.mxu0
      %v2258 = vadd.f32 %v2163, %v2257
      %v2259 = vpop.f32.mrf.mxu0
      %v2260 = vadd.f32 %v2165, %v2259
      %2261 = vmatprep.mubr.f32.mxu0 0.0
      %2262 = vmatmul.mubr.f32.gmra.mxu0 %v1348
      %v2263 = vpop.f32.mrf.mxu0
      %v2264 = vadd.f32 %v2169, %v2263
      %v2265 = vpop.f32.mrf.mxu0
      %v2266 = vadd.f32 %v2171, %v2265
      %2267 = vmatprep.mubr.f32.mxu0 0.0
      %2268 = vmatmul.mubr.f32.gmra.mxu0 %v1351
      %v2269 = vpop.f32.mrf.mxu0
      %v2270 = vadd.f32 %v2175, %v2269
      %v2271 = vpop.f32.mrf.mxu0
      %v2272 = vadd.f32 %v2177, %v2271
      %2273 = vmatprep.mubr.f32.mxu0 0.0
      %2274 = vmatmul.mubr.f32.gmra.mxu0 %v1354
      %v2275 = vpop.f32.mrf.mxu0
      %v2276 = vadd.f32 %v2181, %v2275
      %v2277 = vpop.f32.mrf.mxu0
      %v2278 = vadd.f32 %v2183, %v2277
      %2279 = vdwg.mxu0
      %v2280 = vadd.f32 %v1901, %v2258
      %v2281 = vadd.f32 %v1903, %v2260
      %v2282 = vadd.f32 %v1907, %v2264
      %v2283 = vadd.f32 %v1909, %v2266
      %v2284 = vadd.f32 %v1913, %v2270
      %v2285 = vadd.f32 %v1915, %v2272
      %v2286 = vadd.f32 %v1919, %v2276
      %v2287 = vadd.f32 %v1921, %v2278
      %v2288 = vld [vmem:[%s8] sm:$0xff]
      %v2289 = vld [vmem:[%s8 + $0x8] sm:$0xff]
      %v2290 = vld [vmem:[%s8 + $0x10] sm:$0xff]
      %v2291 = vld [vmem:[%s8 + $0x18] sm:$0xff]
      %v2292 = vld [vmem:[%s8 + $0x20] sm:$0xff]
      %v2293 = vld [vmem:[%s8 + $0x28] sm:$0xff]
      %v2294 = vld [vmem:[%s8 + $0x30] sm:$0xff]
      %v2295 = vld [vmem:[%s8 + $0x38] sm:$0xff]
      %v2296 = vld [vmem:[%s10] sm:$0xff]
      %v2297 = vld [vmem:[%s10 + $0x8] sm:$0xff]
      %v2298 = vld [vmem:[%s10 + $0x10] sm:$0xff]
      %v2299 = vld [vmem:[%s10 + $0x18] sm:$0xff]
      %v2300 = vmul.f32 %v2288, %v2280
      %v2301 = vmul.f32 %v2289, %v2281
      %v2302 = vmul.f32 %v2290, %v2282
      %v2303 = vmul.f32 %v2291, %v2283
      %v2304 = vmul.f32 %v2292, %v2284
      %v2305 = vmul.f32 %v2293, %v2285
      %v2306 = vmul.f32 %v2294, %v2286
      %v2307 = vmul.f32 %v2295, %v2287
      %v2308 = vadd.f32 %v2296, %v2300
      %v2309 = vadd.f32 %v2297, %v2302
      %v2310 = vadd.f32 %v2298, %v2304
      %v2311 = vadd.f32 %v2299, %v2306
      %2316 = vrot.lane.b32.xlu0 %v2300, 96
      %v2317 = vpop.permute.xlu0 %2316
      %2318 = vrot.lane.b32.xlu0 %v2302, 96
      %v2319 = vpop.permute.xlu0 %2318
      %2320 = vrot.lane.b32.xlu0 %v2304, 96
      %v2321 = vpop.permute.xlu0 %2320
      %2322 = vrot.lane.b32.xlu0 %v2306, 96
      %v2323 = vpop.permute.xlu0 %2322
      %v2328 = vadd.f32 %v2308, %v2317
      %v2329 = vadd.f32 %v2309, %v2319
      %v2330 = vadd.f32 %v2310, %v2321
      %v2331 = vadd.f32 %v2311, %v2323
      %2332 = vrot.lane.b32.xlu0 %v2300, 64
      %v2333 = vpop.permute.xlu0 %2332
      %2334 = vrot.lane.b32.xlu0 %v2302, 64
      %v2335 = vpop.permute.xlu0 %2334
      %2336 = vrot.lane.b32.xlu0 %v2304, 64
      %v2337 = vpop.permute.xlu0 %2336
      %2338 = vrot.lane.b32.xlu0 %v2306, 64
      %v2339 = vpop.permute.xlu0 %2338
      %v2344 = vadd.f32 %v2328, %v2333
      %v2345 = vadd.f32 %v2329, %v2335
      %v2346 = vadd.f32 %v2330, %v2337
      %v2347 = vadd.f32 %v2331, %v2339
      %2348 = vrot.lane.b32.xlu0 %v2300, 32
      %v2349 = vpop.permute.xlu0 %2348
      %2350 = vrot.lane.b32.xlu0 %v2302, 32
      %v2351 = vpop.permute.xlu0 %2350
      %2352 = vrot.lane.b32.xlu0 %v2304, 32
      %v2353 = vpop.permute.xlu0 %2352
      %2354 = vrot.lane.b32.xlu0 %v2306, 32
      %v2355 = vpop.permute.xlu0 %2354
      %v2360 = vadd.f32 %v2344, %v2349
      %v2361 = vadd.f32 %v2345, %v2351
      %v2362 = vadd.f32 %v2346, %v2353
      %v2363 = vadd.f32 %v2347, %v2355
      %v2364 = vadd.f32 %v2360, %v2301
      %v2365 = vadd.f32 %v2361, %v2303
      %v2366 = vadd.f32 %v2362, %v2305
      %v2367 = vadd.f32 %v2363, %v2307
      %2372 = vrot.lane.b32.xlu0 %v2301, 96
      %v2373 = vpop.permute.xlu0 %2372
      %2374 = vrot.lane.b32.xlu0 %v2303, 96
      %v2375 = vpop.permute.xlu0 %2374
      %2376 = vrot.lane.b32.xlu0 %v2305, 96
      %v2377 = vpop.permute.xlu0 %2376
      %2378 = vrot.lane.b32.xlu0 %v2307, 96
      %v2379 = vpop.permute.xlu0 %2378
      %v2384 = vadd.f32 %v2364, %v2373
      %v2385 = vadd.f32 %v2365, %v2375
      %v2386 = vadd.f32 %v2366, %v2377
      %v2387 = vadd.f32 %v2367, %v2379
      %2388 = vrot.lane.b32.xlu0 %v2301, 64
      %v2389 = vpop.permute.xlu0 %2388
      %2390 = vrot.lane.b32.xlu0 %v2303, 64
      %v2391 = vpop.permute.xlu0 %2390
      %2392 = vrot.lane.b32.xlu0 %v2305, 64
      %v2393 = vpop.permute.xlu0 %2392
      %2394 = vrot.lane.b32.xlu0 %v2307, 64
      %v2395 = vpop.permute.xlu0 %2394
      %v2400 = vadd.f32 %v2384, %v2389
      %v2401 = vadd.f32 %v2385, %v2391
      %v2402 = vadd.f32 %v2386, %v2393
      %v2403 = vadd.f32 %v2387, %v2395
      %2404 = vrot.lane.b32.xlu0 %v2301, 32
      %v2405 = vpop.permute.xlu0 %2404
      %2406 = vrot.lane.b32.xlu0 %v2303, 32
      %v2407 = vpop.permute.xlu0 %2406
      %2408 = vrot.lane.b32.xlu0 %v2305, 32
      %v2409 = vpop.permute.xlu0 %2408
      %2410 = vrot.lane.b32.xlu0 %v2307, 32
      %v2411 = vpop.permute.xlu0 %2410
      %v2416 = vadd.f32 %v2400, %v2405
      %v2417 = vadd.f32 %v2401, %v2407
      %v2418 = vadd.f32 %v2402, %v2409
      %v2419 = vadd.f32 %v2403, %v2411
      %v2420 = vtanh.pop %v2416
      %v2421 = vtanh.pop %v2417
      %v2422 = vtanh.pop %v2418
      %v2423 = vtanh.pop %v2419
      %2424 = vrot.lane.b32.xlu0 %v404, 32
      %v2425 = vpop.permute.xlu0 %2424
      %2426 = vrot.lane.b32.xlu0 %v405, 32
      %v2427 = vpop.permute.xlu0 %2426
      %2428 = vrot.lane.b32.xlu0 %v406, 32
      %v2429 = vpop.permute.xlu0 %2428
      %2430 = vrot.lane.b32.xlu0 %v407, 32
      %v2431 = vpop.permute.xlu0 %2430
      %v2436 = vmul.f32 %v1707, %v2425
      %v2437 = vmul.f32 %v1709, %v2427
      %v2438 = vmul.f32 %v1711, %v2429
      %v2439 = vmul.f32 %v1713, %v2431
      %v2440 = vsub.f32 1.0, %v1707
      %v2441 = vsub.f32 1.0, %v1709
      %v2442 = vsub.f32 1.0, %v1711
      %v2443 = vsub.f32 1.0, %v1713
      %2448 = vrot.lane.b32.xlu0 %v2420, 32
      %v2449 = vpop.permute.xlu0 %2448
      %2450 = vrot.lane.b32.xlu0 %v2421, 32
      %v2451 = vpop.permute.xlu0 %2450
      %2452 = vrot.lane.b32.xlu0 %v2422, 32
      %v2453 = vpop.permute.xlu0 %2452
      %2454 = vrot.lane.b32.xlu0 %v2423, 32
      %v2455 = vpop.permute.xlu0 %2454
      %v2460 = vmul.f32 %v2440, %v2449
      %v2461 = vmul.f32 %v2441, %v2451
      %v2462 = vmul.f32 %v2442, %v2453
      %v2463 = vmul.f32 %v2443, %v2455
      %v2464 = vadd.f32 %v2436, %v2460
      %v2465 = vadd.f32 %v2437, %v2461
      %v2466 = vadd.f32 %v2438, %v2462
      %v2467 = vadd.f32 %v2439, %v2463
      %2472 = vrot.lane.b32.xlu0 %v2464, 96
      %v2473 = vpop.permute.xlu0 %2472
      %2474 = vrot.lane.b32.xlu0 %v2465, 96
      %v2475 = vpop.permute.xlu0 %2474
      %2476 = vrot.lane.b32.xlu0 %v2466, 96
      %v2477 = vpop.permute.xlu0 %2476
      %2478 = vrot.lane.b32.xlu0 %v2467, 96
      %v2479 = vpop.permute.xlu0 %2478
      %2484 = vst.msk [vmem:[#allocation2] sm:$0xff] %vm585, %v2473
      %2485 = vst.msk [vmem:[#allocation2 + $0x8] sm:$0xff] %vm585, %v2475
      %2486 = vst.msk [vmem:[#allocation2 + $0x10] sm:$0xff] %vm585, %v2477
      %2487 = vst.msk [vmem:[#allocation2 + $0x18] sm:$0xff] %vm585, %v2479
      %2488 = vst.msk [vmem:[%s386] sm:$0xff] %vm585, %v2473
      %2489 = vst.msk [vmem:[%s386 + $0x8] sm:$0xff] %vm585, %v2475
      %2490 = vst.msk [vmem:[%s386 + $0x10] sm:$0xff] %vm585, %v2477
      %2491 = vst.msk [vmem:[%s386 + $0x18] sm:$0xff] %vm585, %v2479
      %p2492 = scmp.lt.s32.totalorder %s22, 7
      %s2493 = scalar_select %p2492, %s22, 7
      %s2494 = smul.addr %s2493, 4
      %s2495 = smul.addr %s2494, 8
      %s2496 = scalar_lea.vmem %s11, %s2495
      // Predicated region
      $region69: #{agcrn_cell_sequence.1} parent=63 // pred_check
        %p2497 = pneg %p276
      $region70: #{agcrn_cell_sequence.1} parent=63 // pred_check_branch
        %2499 = sbr.rel (%p2497) target = $region72
      $region71: #{agcrn_cell_sequence.1} parent=63 // pred_region
        _
      $region72: #{agcrn_cell_sequence.1} parent=63 // pred_fallthru
        _
    $region64: #{agcrn_cell_sequence.1} parent=5 // pred_fallthru
      _
    %p2500 = scmp.le.s32.totalorder 2, %s17
    // Predicated region
    $region73: #{agcrn_cell_sequence.1} parent=5 // pred_check
      %p2501 = pneg %p2500
    $region74: #{agcrn_cell_sequence.1} parent=5 // pred_check_branch
      %2503 = sbr.rel (%p2501) target = $region76
    $region75: #{agcrn_cell_sequence.1} parent=5 // pred_region
      %s2504 = ssub.s32 %s17, 2
      // Predicated region
      $region77: #{agcrn_cell_sequence.1} parent=75 // pred_check
        %p2505 = pneg %p282
      $region78: #{agcrn_cell_sequence.1} parent=75 // pred_check_branch
        %2507 = sbr.rel (%p2505) target = $region80
      $region79: #{agcrn_cell_sequence.1} parent=75 // pred_region
        %p2508 = scmp.lt.s32.totalorder %s23, 7
        %s2509 = scalar_select %p2508, %s23, 7
        %s2510 = smul.addr %s2509, 4
        %s2511 = smul.addr %s2510, 8
        %s2512 = scalar_lea.vmem %s11, %s2511
      $region80: #{agcrn_cell_sequence.1} parent=75 // pred_fallthru
        _
    $region76: #{agcrn_cell_sequence.1} parent=5 // pred_fallthru
      _
  $region6: #{agcrn_cell_sequence.1} parent=0 // loop_footer
    %s21 = sadd.s32 1, %s17
  $region7: #{agcrn_cell_sequence.1} parent=0 // loop_footer_branch
    %16 = sbr.rel target = $region3
  $region8: #{agcrn_cell_sequence.1} parent=0 // loop_exit
    _

</llo_original>
